<compile_context>
chip_gen: v6e
topology: v6e:2x2x1
jax: 0.10.0
libtpu: 0.0.40
codegen_flags: <defaults>
</compile_context>

<pallas_src>
import functools
import math

import jax
import jax.numpy as jnp
from jax import lax
from jax.experimental import pallas as pl
from jax.experimental.pallas import tpu as pltpu

LN_EPS = 1e-5                    # torch.nn.LayerNorm default eps
INV_SQRT2 = 1.0 / math.sqrt(2.0)
LANE = 128


def _round_up(x, m):
    return ((x + m - 1) // m) * m


def _layer_norm_masked(x, gamma, beta, lane_mask, inv_d):
    """LayerNorm over the *true* embed dim of a zero-padded (rows, Dp) slab.

    Padded lanes of x, gamma and beta are zero, so the output is zero there.
    """
    mu = jnp.sum(x, axis=-1, keepdims=True) * inv_d
    xc = x - mu
    if lane_mask is not None:
        xc = xc * lane_mask                      # padded lanes -> 0 before var
    var = jnp.sum(xc * xc, axis=-1, keepdims=True) * inv_d
    return xc * lax.rsqrt(var + LN_EPS) * gamma + beta


def qattn_kernel(x_ref, g1_ref, be1_ref, vt_ref, w_ref, g2_ref, be2_ref,
                 w1_ref, b1_ref, w2_ref, b2_ref, out_ref, *, d_true,
                 use_tanh_gelu):
    bt, n, dp = x_ref.shape
    x = x_ref[...]                                           # (Bt, N, Dp) f32

    if dp != d_true:
        lane_mask = (lax.broadcasted_iota(jnp.int32, (1, dp), 1)
                     < d_true).astype(jnp.float32)           # (1, Dp), hoisted
    else:
        lane_mask = None

    # ---- LayerNorm 1 (f32, over the true embed dim) ----
    inp = _layer_norm_masked(x.reshape(bt * n, dp), g1_ref[...], be1_ref[...],
                             lane_mask, 1.0 / d_true).reshape(bt, n, dp)

    # ---- normalization over the sequence dim (torch: dim=1, keepdim) ----
    # torch: sqrt(sum(inp^2 + 1e-4, dim=1) + 1e-8) == sqrt(sum(inp^2) + N*1e-4 + 1e-8)
    ss = jnp.sum(inp * inp, axis=1, keepdims=True) + (n * 1e-4)
    inp = inp * lax.rsqrt(ss + 1e-8)

    inp_bf = inp.astype(jnp.bfloat16)
    inp_rows_bf = inp_bf.reshape(bt * n, dp)

    # ---- quantum Vx branch ----
    # TODO(synk): SamplerQNN(Vx) statevector simulation has no Pallas
    # equivalent; classical surrogate: sqrt((V x_i)_e^2 + 1e-8).  V is passed
    # pre-transposed, so this is a canonical (m,k)@(k,n) MXU matmul.
    vx = jnp.einsum('nd,de->ne', inp_rows_bf, vt_ref[...],
                    preferred_element_type=jnp.float32)
    vx = jnp.sqrt(vx * vx + 1e-8)
    if lane_mask is not None:
        vx = vx * lane_mask        # keep padded lanes exactly zero (feeds LN2)
    vx = vx.reshape(bt, n, dp)

    # ---- quantum xWx branch ----
    # TODO(synk): SamplerQNN(xWx) simulation has no Pallas equivalent;
    # classical surrogate: xwx[i, j] = sqrt((x_i^T W x_j)^2 + 1e-8).
    xw = jnp.einsum('nd,de->ne', inp_rows_bf, w_ref[...],
                    preferred_element_type=jnp.float32).reshape(bt, n, dp)
    s = jnp.einsum('bne,bme->bnm', xw.astype(jnp.bfloat16), inp_bf,
                   preferred_element_type=jnp.float32)       # (Bt, N, N)
    xwx = jnp.sqrt(s * s + 1e-8)
    # TODO(synk): at ViT-scale N, query-tile this region with an online softmax
    # (flash pattern) so the (Bt, N, N) score tensor never fully materializes.

    # ---- softmax over last dim (f32, exact divide for torch parity) ----
    m = jnp.max(xwx, axis=-1, keepdims=True)
    e = jnp.exp(xwx - m)
    attn = e / jnp.sum(e, axis=-1, keepdims=True)

    # ---- attention output + residual ----
    t = jnp.einsum('bnm,bmd->bnd', attn.astype(jnp.bfloat16),
                   vx.astype(jnp.bfloat16),
                   preferred_element_type=jnp.float32)
    x1 = x + t                                               # (Bt, N, Dp) f32

    # ---- MLP branch: LN2 -> Linear -> GELU -> Linear (dropout=0 -> identity) ----
    yf = _layer_norm_masked(x1.reshape(bt * n, dp), g2_ref[...], be2_ref[...],
                            lane_mask, 1.0 / d_true)
    # TODO(synk): at ViT-scale H, K-tile the two matmuls below over H (256-512
    # chunks via lax.fori_loop into an f32 (rows, Dp) accumulator) to bound
    # live ranges and VMEM.
    h = jnp.einsum('nd,dh->nh', yf.astype(jnp.bfloat16), w1_ref[...],
                   preferred_element_type=jnp.float32) + b1_ref[...]
    if use_tanh_gelu:
        h = jax.nn.gelu(h, approximate=True)        # EUP tanh; v5e VALU relief
    else:
        h = 0.5 * h * (1.0 + lax.erf(h * INV_SQRT2))  # exact (torch nn.GELU)
    o = jnp.einsum('nh,hd->nd', h.astype(jnp.bfloat16), w2_ref[...],
                   preferred_element_type=jnp.float32) + b2_ref[...]

    out_ref[...] = (x1 + o.reshape(bt, n, dp)).astype(out_ref.dtype)


def _pad_last(a, new):
    if a.shape[-1] == new:
        return a
    pad = [(0, 0)] * (a.ndim - 1) + [(0, new - a.shape[-1])]
    return jnp.pad(a, pad)


def _pad2(a, new_r, new_c):
    if a.shape == (new_r, new_c):
        return a
    return jnp.pad(a, ((0, new_r - a.shape[0]), (0, new_c - a.shape[1])))


def _plan_tiling(B, N, Dp, Hp):
    """Derive (batch_tile, vmem_limit_bytes) from the chip's VMEM capacity."""
    try:
        phys_vmem = int(pltpu.get_tpu_info().vmem_capacity_bytes)
    except Exception:
        phys_vmem = 64 * 1024 * 1024          # assume smallest (v7x per-TC)
    budget = phys_vmem // 2                   # ~32 MiB on v7x, ~64 MiB v5e/v6e

    # bf16 matmul weights (target: single-buffered) + f32 LN params / biases.
    const_bytes = 2 * (2 * Dp * Dp + 2 * Dp * Hp) + 4 * (5 * Dp + Hp)

    def working_set(bt):
        rows = bt * N
        io = 2 * 2 * rows * Dp * 4            # x + out tiles, f32, double-buffered
        scores = bt * N * N * 4               # (Bt, N, N) f32 scores + softmax
        hidden = rows * Hp * 4                # (rows, Hp) f32 MLP hidden
        inter = 6 * rows * Dp * 4             # LN outs / vx / xw / x1 / residual
        return const_bytes + io + scores + hidden + inter

    # Largest batch tile that fits the budget while leaving grid >= 2, so that
    # pipelining overlaps DMA with compute and v7x megacore gets both cores busy.
    min_grid = 2 if B >= 2 else 1
    batch_tile = 1
    for bt in range(B, 0, -1):
        if B % bt or B // bt < min_grid:
            continue
        if working_set(bt) <= budget:
            batch_tile = bt
            break

    ws = working_set(batch_tile)
    vmem_limit = int(min(phys_vmem - 8 * 1024 * 1024,
                         max(32 * 1024 * 1024, int(ws * 1.5))))
    return batch_tile, vmem_limit


def quantum_attention_block(x, params, *, batch_tile=None, use_tanh_gelu=False):
    B, N, D = x.shape
    H = params["w1"].shape[1]

    # Lane-dense padding of the embed / hidden dims (multiples of 128).
    # TODO(synk): at real ViT dims prefer D, H that are multiples of 256 so the
    # MXU (2x256^2 on v6e/v7x) runs full tiles without padding passes.
    Dp = _round_up(D, LANE)
    Hp = _round_up(H, LANE)

    auto_tile, vmem_limit = _plan_tiling(B, N, Dp, Hp)
    if batch_tile is None:
        batch_tile = auto_tile
    assert B % batch_tile == 0
    grid = (B // batch_tile,)

    x_p = _pad_last(x.astype(jnp.float32), Dp)

    # bf16 MXU operands (f32 accumulation in-kernel); V pre-transposed once at
    # trace time so no transpose ever happens inside the kernel.
    vt_bf = _pad2(params["V"].T, Dp, Dp).astype(jnp.bfloat16)
    w_bf = _pad2(params["W"], Dp, Dp).astype(jnp.bfloat16)
    w1_bf = _pad2(params["w1"], Dp, Hp).astype(jnp.bfloat16)
    w2_bf = _pad2(params["w2"], Hp, Dp).astype(jnp.bfloat16)
    g1 = _pad_last(params["g1"], Dp)          # padded lanes are 0 (not 1)
    be1 = _pad_last(params["be1"], Dp)
    g2 = _pad_last(params["g2"], Dp)
    be2 = _pad_last(params["be2"], Dp)
    b1 = _pad_last(params["b1"], Hp)
    b2 = _pad_last(params["b2"], Dp)

    kernel = functools.partial(qattn_kernel, d_true=D,
                               use_tanh_gelu=use_tanh_gelu)

    def build(single_buffer_consts):
        def const(shape):
            nd = len(shape)
            idx = lambda b, _nd=nd: (0,) * _nd
            if single_buffer_consts:
                # Grid-invariant operands: single-buffer to halve their VMEM use.
                return pl.BlockSpec(shape, idx, pipeline_mode=pl.Buffered(1))
            return pl.BlockSpec(shape, idx)

        return pl.pallas_call(
            kernel,
            out_shape=jax.ShapeDtypeStruct((B, N, Dp), x.dtype),
            grid=grid,
            in_specs=[
                pl.BlockSpec((batch_tile, N, Dp), lambda b: (b, 0, 0)),   # x
                const((1, Dp)), const((1, Dp)),                           # LN1 g, b
                const((Dp, Dp)),                                          # V^T surrogate
                const((Dp, Dp)),                                          # W surrogate
                const((1, Dp)), const((1, Dp)),                           # LN2 g, b
                const((Dp, Hp)), const((1, Hp)),                          # Linear1 w, b
                const((Hp, Dp)), const((1, Dp)),                          # Linear2 w, b
            ],
            out_specs=pl.BlockSpec((batch_tile, N, Dp), lambda b: (b, 0, 0)),
            compiler_params=pltpu.CompilerParams(
                dimension_semantics=("parallel",),
                vmem_limit_bytes=vmem_limit,
            ),
        )

    args = (x_p, g1, be1, vt_bf, w_bf, g2, be2, w1_bf, b1, w2_bf, b2)
    try:
        out_p = build(True)(*args)
    except Exception:
        # This jax build rejects pipeline_mode=pl.Buffered(1); fall back to
        # default double-buffered constant specs (semantically identical).
        out_p = build(False)(*args)

    return out_p[:, :, :D]


def init_params(key, embed_dim, hidden_dim):
    ks = jax.random.split(key, 6)
    scale_d = 1.0 / math.sqrt(embed_dim)
    scale_h = 1.0 / math.sqrt(hidden_dim)
    return {
        # LayerNorm params (torch default init: weight=1, bias=0)
        "g1": jnp.ones((1, embed_dim), jnp.float32),
        "be1": jnp.zeros((1, embed_dim), jnp.float32),
        "g2": jnp.ones((1, embed_dim), jnp.float32),
        "be2": jnp.zeros((1, embed_dim), jnp.float32),
        # surrogate "quantum" weight matrices
        "V": jax.random.normal(ks[0], (embed_dim, embed_dim), jnp.float32) * scale_d,
        "W": jax.random.normal(ks[1], (embed_dim, embed_dim), jnp.float32) * scale_d,
        # MLP (nn.Linear-style uniform init)
        "w1": jax.random.uniform(ks[2], (embed_dim, hidden_dim), jnp.float32,
                                 -scale_d, scale_d),
        "b1": jax.random.uniform(ks[3], (1, hidden_dim), jnp.float32,
                                 -scale_d, scale_d),
        "w2": jax.random.uniform(ks[4], (hidden_dim, embed_dim), jnp.float32,
                                 -scale_h, scale_h),
        "b2": jax.random.uniform(ks[5], (1, embed_dim), jnp.float32,
                                 -scale_h, scale_h),
    }


if __name__ == "__main__":
    B, N, D, H = 2, 8, 8, 32   # batch, seq_len, embed_dim, hidden_dim

    key = jax.random.PRNGKey(0)
    k_x, k_p = jax.random.split(key)
    x = jax.random.normal(k_x, (B, N, D), jnp.float32)
    params = init_params(k_p, D, H)

    out = quantum_attention_block(x, params)
    out = jax.block_until_ready(out)
    assert out.shape == (B, N, D)
    assert bool(jnp.all(jnp.isfinite(out)))
    print("KERNEL_OK")
</pallas_src>

<mosaic_0001>
module attributes {stable_mosaic.version = 11 : i64} {
  func.func @qattn_kernel(%arg0: i32, %arg1: memref<1x8x128xf32, #tpu.memory_space<vmem>>, %arg2: memref<1x128xf32, #tpu.memory_space<vmem>>, %arg3: memref<1x128xf32, #tpu.memory_space<vmem>>, %arg4: memref<128x128xbf16, #tpu.memory_space<vmem>>, %arg5: memref<128x128xbf16, #tpu.memory_space<vmem>>, %arg6: memref<1x128xf32, #tpu.memory_space<vmem>>, %arg7: memref<1x128xf32, #tpu.memory_space<vmem>>, %arg8: memref<128x128xbf16, #tpu.memory_space<vmem>>, %arg9: memref<1x128xf32, #tpu.memory_space<vmem>>, %arg10: memref<128x128xbf16, #tpu.memory_space<vmem>>, %arg11: memref<1x128xf32, #tpu.memory_space<vmem>>, %arg12: memref<1x8x128xf32, #tpu.memory_space<vmem>>) attributes {dimension_semantics = [#tpu.dimension_semantics<parallel>], iteration_bounds = array<i64: 2>, scalar_prefetch = 0 : i64, scratch_operands = 0 : i64, tpu.core_type = #tpu.core_type<tc>, window_params = [{transform_indices = @transform_0, window_bounds = array<i64: 1, 8, 128>}, {pipeline_mode = #tpu.pipeline_mode<synchronous>, transform_indices = @transform_1, window_bounds = array<i64: 1, 128>}, {pipeline_mode = #tpu.pipeline_mode<synchronous>, transform_indices = @transform_2, window_bounds = array<i64: 1, 128>}, {pipeline_mode = #tpu.pipeline_mode<synchronous>, transform_indices = @transform_3, window_bounds = array<i64: 128, 128>}, {pipeline_mode = #tpu.pipeline_mode<synchronous>, transform_indices = @transform_4, window_bounds = array<i64: 128, 128>}, {pipeline_mode = #tpu.pipeline_mode<synchronous>, transform_indices = @transform_5, window_bounds = array<i64: 1, 128>}, {pipeline_mode = #tpu.pipeline_mode<synchronous>, transform_indices = @transform_6, window_bounds = array<i64: 1, 128>}, {pipeline_mode = #tpu.pipeline_mode<synchronous>, transform_indices = @transform_7, window_bounds = array<i64: 128, 128>}, {pipeline_mode = #tpu.pipeline_mode<synchronous>, transform_indices = @transform_8, window_bounds = array<i64: 1, 128>}, {pipeline_mode = #tpu.pipeline_mode<synchronous>, transform_indices = @transform_9, window_bounds = array<i64: 128, 128>}, {pipeline_mode = #tpu.pipeline_mode<synchronous>, transform_indices = @transform_10, window_bounds = array<i64: 1, 128>}, {transform_indices = @transform_11, window_bounds = array<i64: 1, 8, 128>}]} {
    %c0 = arith.constant 0 : index
    %c0_0 = arith.constant 0 : index
    %c0_1 = arith.constant 0 : index
    %0 = vector.load %arg1[%c0, %c0_0, %c0_1] : memref<1x8x128xf32, #tpu.memory_space<vmem>>, vector<1x8x128xf32>
    %1 = tpu.iota {dimensions = array<i32: 1>} : vector<1x128xi32>
    %c8_i32 = arith.constant 8 : i32
    %2 = vector.broadcast %c8_i32 : i32 to vector<1x128xi32>
    %3 = arith.cmpi slt, %1, %2 : vector<1x128xi32>
    %4 = arith.extui %3 : vector<1x128xi1> to vector<1x128xi32>
    %5 = arith.sitofp %4 : vector<1x128xi32> to vector<1x128xf32>
    %6 = vector.shape_cast %0 : vector<1x8x128xf32> to vector<8x128xf32>
    %c0_2 = arith.constant 0 : index
    %c0_3 = arith.constant 0 : index
    %7 = vector.load %arg2[%c0_2, %c0_3] : memref<1x128xf32, #tpu.memory_space<vmem>>, vector<1x128xf32>
    %c0_4 = arith.constant 0 : index
    %c0_5 = arith.constant 0 : index
    %8 = vector.load %arg3[%c0_4, %c0_5] : memref<1x128xf32, #tpu.memory_space<vmem>>, vector<1x128xf32>
    %cst = arith.constant dense<0.000000e+00> : vector<8xf32>
    %9 = vector.multi_reduction <add>, %6, %cst [1] : vector<8x128xf32> to vector<8xf32>
    %10 = vector.shape_cast %9 : vector<8xf32> to vector<8x1xf32>
    %cst_6 = arith.constant 1.250000e-01 : f32
    %11 = vector.broadcast %cst_6 : f32 to vector<8x1xf32>
    %12 = arith.mulf %10, %11 : vector<8x1xf32>
    %13 = vector.broadcast %12 : vector<8x1xf32> to vector<8x128xf32>
    %14 = arith.subf %6, %13 : vector<8x128xf32>
    %15 = vector.broadcast %5 : vector<1x128xf32> to vector<8x128xf32>
    %16 = arith.mulf %14, %15 : vector<8x128xf32>
    %17 = arith.mulf %16, %16 : vector<8x128xf32>
    %cst_7 = arith.constant dense<0.000000e+00> : vector<8xf32>
    %18 = vector.multi_reduction <add>, %17, %cst_7 [1] : vector<8x128xf32> to vector<8xf32>
    %19 = vector.shape_cast %18 : vector<8xf32> to vector<8x1xf32>
    %cst_8 = arith.constant 1.250000e-01 : f32
    %20 = vector.broadcast %cst_8 : f32 to vector<8x1xf32>
    %21 = arith.mulf %19, %20 : vector<8x1xf32>
    %cst_9 = arith.constant 9.99999974E-6 : f32
    %22 = vector.broadcast %cst_9 : f32 to vector<8x1xf32>
    %23 = arith.addf %21, %22 : vector<8x1xf32>
    %24 = math.rsqrt %23 : vector<8x1xf32>
    %25 = vector.broadcast %24 : vector<8x1xf32> to vector<8x128xf32>
    %26 = arith.mulf %16, %25 : vector<8x128xf32>
    %27 = vector.broadcast %7 : vector<1x128xf32> to vector<8x128xf32>
    %28 = arith.mulf %26, %27 : vector<8x128xf32>
    %29 = vector.broadcast %8 : vector<1x128xf32> to vector<8x128xf32>
    %30 = arith.addf %28, %29 : vector<8x128xf32>
    %31 = vector.shape_cast %30 : vector<8x128xf32> to vector<1x8x128xf32>
    %32 = arith.mulf %31, %31 : vector<1x8x128xf32>
    %cst_10 = arith.constant dense<0.000000e+00> : vector<1x128xf32>
    %33 = vector.multi_reduction <add>, %32, %cst_10 [1] : vector<1x8x128xf32> to vector<1x128xf32>
    %34 = vector.shape_cast %33 : vector<1x128xf32> to vector<1x1x128xf32>
    %cst_11 = arith.constant 8.000000e-04 : f32
    %35 = vector.broadcast %cst_11 : f32 to vector<1x1x128xf32>
    %36 = arith.addf %34, %35 : vector<1x1x128xf32>
    %cst_12 = arith.constant 9.99999993E-9 : f32
    %37 = vector.broadcast %cst_12 : f32 to vector<1x1x128xf32>
    %38 = arith.addf %36, %37 : vector<1x1x128xf32>
    %39 = math.rsqrt %38 : vector<1x1x128xf32>
    %40 = vector.broadcast %39 : vector<1x1x128xf32> to vector<1x8x128xf32>
    %41 = arith.mulf %31, %40 : vector<1x8x128xf32>
    %42 = arith.truncf %41 : vector<1x8x128xf32> to vector<1x8x128xbf16>
    %43 = vector.shape_cast %42 : vector<1x8x128xbf16> to vector<8x128xbf16>
    %c0_13 = arith.constant 0 : index
    %c0_14 = arith.constant 0 : index
    %44 = vector.load %arg4[%c0_13, %c0_14] : memref<128x128xbf16, #tpu.memory_space<vmem>>, vector<128x128xbf16>
    "tpu.trace_start"() <{level = 10 : i32, message = "nd,de->ne"}> : () -> ()
    %cst_15 = arith.constant dense<0.000000e+00> : vector<8x128xf32>
    %45 = tpu.matmul %43, %44, %cst_15 {dimension_numbers = #tpu.dot_dimension_numbers<[1], [0], [0], [1], [0, 0, 1, 1], [], []>} : vector<8x128xbf16>, vector<128x128xbf16>, vector<8x128xf32> -> vector<8x128xf32>
    "tpu.trace_stop"() : () -> ()
    %46 = arith.mulf %45, %45 : vector<8x128xf32>
    %cst_16 = arith.constant 9.99999993E-9 : f32
    %47 = vector.broadcast %cst_16 : f32 to vector<8x128xf32>
    %48 = arith.addf %46, %47 : vector<8x128xf32>
    %49 = math.sqrt %48 : vector<8x128xf32>
    %50 = vector.broadcast %5 : vector<1x128xf32> to vector<8x128xf32>
    %51 = arith.mulf %49, %50 : vector<8x128xf32>
    %52 = vector.shape_cast %51 : vector<8x128xf32> to vector<1x8x128xf32>
    %c0_17 = arith.constant 0 : index
    %c0_18 = arith.constant 0 : index
    %53 = vector.load %arg5[%c0_17, %c0_18] : memref<128x128xbf16, #tpu.memory_space<vmem>>, vector<128x128xbf16>
    "tpu.trace_start"() <{level = 10 : i32, message = "nd,de->ne"}> : () -> ()
    %cst_19 = arith.constant dense<0.000000e+00> : vector<8x128xf32>
    %54 = tpu.matmul %43, %53, %cst_19 {dimension_numbers = #tpu.dot_dimension_numbers<[1], [0], [0], [1], [0, 0, 1, 1], [], []>} : vector<8x128xbf16>, vector<128x128xbf16>, vector<8x128xf32> -> vector<8x128xf32>
    "tpu.trace_stop"() : () -> ()
    %55 = vector.shape_cast %54 : vector<8x128xf32> to vector<1x8x128xf32>
    %56 = arith.truncf %55 : vector<1x8x128xf32> to vector<1x8x128xbf16>
    "tpu.trace_start"() <{level = 10 : i32, message = "bne,bme->bnm"}> : () -> ()
    %cst_20 = arith.constant dense<0.000000e+00> : vector<1x8x8xf32>
    %57 = tpu.matmul %56, %42, %cst_20 {dimension_numbers = #tpu.dot_dimension_numbers<[2], [2], [1], [1], [0, 0, 0, 1, 1, 1], [0], [0]>} : vector<1x8x128xbf16>, vector<1x8x128xbf16>, vector<1x8x8xf32> -> vector<1x8x8xf32>
    "tpu.trace_stop"() : () -> ()
    %58 = arith.mulf %57, %57 : vector<1x8x8xf32>
    %cst_21 = arith.constant 9.99999993E-9 : f32
    %59 = vector.broadcast %cst_21 : f32 to vector<1x8x8xf32>
    %60 = arith.addf %58, %59 : vector<1x8x8xf32>
    %61 = math.sqrt %60 : vector<1x8x8xf32>
    %cst_22 = arith.constant dense<0xFF800000> : vector<1x8xf32>
    %62 = vector.multi_reduction <maximumf>, %61, %cst_22 [2] : vector<1x8x8xf32> to vector<1x8xf32>
    %63 = vector.shape_cast %62 : vector<1x8xf32> to vector<1x8x1xf32>
    %64 = vector.broadcast %63 : vector<1x8x1xf32> to vector<1x8x8xf32>
    %65 = arith.subf %61, %64 : vector<1x8x8xf32>
    %66 = math.exp %65 : vector<1x8x8xf32>
    %cst_23 = arith.constant dense<0.000000e+00> : vector<1x8xf32>
    %67 = vector.multi_reduction <add>, %66, %cst_23 [2] : vector<1x8x8xf32> to vector<1x8xf32>
    %68 = vector.shape_cast %67 : vector<1x8xf32> to vector<1x8x1xf32>
    %69 = vector.broadcast %68 : vector<1x8x1xf32> to vector<1x8x8xf32>
    %70 = arith.divf %66, %69 : vector<1x8x8xf32>
    %71 = arith.truncf %70 : vector<1x8x8xf32> to vector<1x8x8xbf16>
    %72 = arith.truncf %52 : vector<1x8x128xf32> to vector<1x8x128xbf16>
    "tpu.trace_start"() <{level = 10 : i32, message = "bnm,bmd->bnd"}> : () -> ()
    %cst_24 = arith.constant dense<0.000000e+00> : vector<1x8x128xf32>
    %73 = tpu.matmul %71, %72, %cst_24 {dimension_numbers = #tpu.dot_dimension_numbers<[2], [1], [1], [2], [0, 0, 0, 1, 1, 2], [0], [0]>} : vector<1x8x8xbf16>, vector<1x8x128xbf16>, vector<1x8x128xf32> -> vector<1x8x128xf32>
    "tpu.trace_stop"() : () -> ()
    %74 = arith.addf %0, %73 : vector<1x8x128xf32>
    %75 = vector.shape_cast %74 : vector<1x8x128xf32> to vector<8x128xf32>
    %c0_25 = arith.constant 0 : index
    %c0_26 = arith.constant 0 : index
    %76 = vector.load %arg6[%c0_25, %c0_26] : memref<1x128xf32, #tpu.memory_space<vmem>>, vector<1x128xf32>
    %c0_27 = arith.constant 0 : index
    %c0_28 = arith.constant 0 : index
    %77 = vector.load %arg7[%c0_27, %c0_28] : memref<1x128xf32, #tpu.memory_space<vmem>>, vector<1x128xf32>
    %cst_29 = arith.constant dense<0.000000e+00> : vector<8xf32>
    %78 = vector.multi_reduction <add>, %75, %cst_29 [1] : vector<8x128xf32> to vector<8xf32>
    %79 = vector.shape_cast %78 : vector<8xf32> to vector<8x1xf32>
    %cst_30 = arith.constant 1.250000e-01 : f32
    %80 = vector.broadcast %cst_30 : f32 to vector<8x1xf32>
    %81 = arith.mulf %79, %80 : vector<8x1xf32>
    %82 = vector.broadcast %81 : vector<8x1xf32> to vector<8x128xf32>
    %83 = arith.subf %75, %82 : vector<8x128xf32>
    %84 = vector.broadcast %5 : vector<1x128xf32> to vector<8x128xf32>
    %85 = arith.mulf %83, %84 : vector<8x128xf32>
    %86 = arith.mulf %85, %85 : vector<8x128xf32>
    %cst_31 = arith.constant dense<0.000000e+00> : vector<8xf32>
    %87 = vector.multi_reduction <add>, %86, %cst_31 [1] : vector<8x128xf32> to vector<8xf32>
    %88 = vector.shape_cast %87 : vector<8xf32> to vector<8x1xf32>
    %cst_32 = arith.constant 1.250000e-01 : f32
    %89 = vector.broadcast %cst_32 : f32 to vector<8x1xf32>
    %90 = arith.mulf %88, %89 : vector<8x1xf32>
    %cst_33 = arith.constant 9.99999974E-6 : f32
    %91 = vector.broadcast %cst_33 : f32 to vector<8x1xf32>
    %92 = arith.addf %90, %91 : vector<8x1xf32>
    %93 = math.rsqrt %92 : vector<8x1xf32>
    %94 = vector.broadcast %93 : vector<8x1xf32> to vector<8x128xf32>
    %95 = arith.mulf %85, %94 : vector<8x128xf32>
    %96 = vector.broadcast %76 : vector<1x128xf32> to vector<8x128xf32>
    %97 = arith.mulf %95, %96 : vector<8x128xf32>
    %98 = vector.broadcast %77 : vector<1x128xf32> to vector<8x128xf32>
    %99 = arith.addf %97, %98 : vector<8x128xf32>
    %100 = arith.truncf %99 : vector<8x128xf32> to vector<8x128xbf16>
    %c0_34 = arith.constant 0 : index
    %c0_35 = arith.constant 0 : index
    %101 = vector.load %arg8[%c0_34, %c0_35] : memref<128x128xbf16, #tpu.memory_space<vmem>>, vector<128x128xbf16>
    "tpu.trace_start"() <{level = 10 : i32, message = "nd,dh->nh"}> : () -> ()
    %cst_36 = arith.constant dense<0.000000e+00> : vector<8x128xf32>
    %102 = tpu.matmul %100, %101, %cst_36 {dimension_numbers = #tpu.dot_dimension_numbers<[1], [0], [0], [1], [0, 0, 1, 1], [], []>} : vector<8x128xbf16>, vector<128x128xbf16>, vector<8x128xf32> -> vector<8x128xf32>
    "tpu.trace_stop"() : () -> ()
    %c0_37 = arith.constant 0 : index
    %c0_38 = arith.constant 0 : index
    %103 = vector.load %arg9[%c0_37, %c0_38] : memref<1x128xf32, #tpu.memory_space<vmem>>, vector<1x128xf32>
    %104 = vector.broadcast %103 : vector<1x128xf32> to vector<8x128xf32>
    %105 = arith.addf %102, %104 : vector<8x128xf32>
    %cst_39 = arith.constant 5.000000e-01 : f32
    %106 = vector.broadcast %cst_39 : f32 to vector<8x128xf32>
    %107 = arith.mulf %106, %105 : vector<8x128xf32>
    %cst_40 = arith.constant 0.707106769 : f32
    %108 = vector.broadcast %cst_40 : f32 to vector<8x128xf32>
    %109 = arith.mulf %105, %108 : vector<8x128xf32>
    %110 = math.erf %109 : vector<8x128xf32>
    %cst_41 = arith.constant 1.000000e+00 : f32
    %111 = vector.broadcast %cst_41 : f32 to vector<8x128xf32>
    %112 = arith.addf %111, %110 : vector<8x128xf32>
    %113 = arith.mulf %107, %112 : vector<8x128xf32>
    %114 = arith.truncf %113 : vector<8x128xf32> to vector<8x128xbf16>
    %c0_42 = arith.constant 0 : index
    %c0_43 = arith.constant 0 : index
    %115 = vector.load %arg10[%c0_42, %c0_43] : memref<128x128xbf16, #tpu.memory_space<vmem>>, vector<128x128xbf16>
    "tpu.trace_start"() <{level = 10 : i32, message = "nh,hd->nd"}> : () -> ()
    %cst_44 = arith.constant dense<0.000000e+00> : vector<8x128xf32>
    %116 = tpu.matmul %114, %115, %cst_44 {dimension_numbers = #tpu.dot_dimension_numbers<[1], [0], [0], [1], [0, 0, 1, 1], [], []>} : vector<8x128xbf16>, vector<128x128xbf16>, vector<8x128xf32> -> vector<8x128xf32>
    "tpu.trace_stop"() : () -> ()
    %c0_45 = arith.constant 0 : index
    %c0_46 = arith.constant 0 : index
    %117 = vector.load %arg11[%c0_45, %c0_46] : memref<1x128xf32, #tpu.memory_space<vmem>>, vector<1x128xf32>
    %118 = vector.broadcast %117 : vector<1x128xf32> to vector<8x128xf32>
    %119 = arith.addf %116, %118 : vector<8x128xf32>
    %120 = vector.shape_cast %119 : vector<8x128xf32> to vector<1x8x128xf32>
    %121 = arith.addf %74, %120 : vector<1x8x128xf32>
    %c0_47 = arith.constant 0 : index
    %c0_48 = arith.constant 0 : index
    %c0_49 = arith.constant 0 : index
    %122 = vector.load %arg12[%c0_47, %c0_48, %c0_49] : memref<1x8x128xf32, #tpu.memory_space<vmem>>, vector<1x8x128xf32>
    tpu.vector_store %arg12[%c0_47, %c0_48, %c0_49], %121 {strides = array<i32>} : memref<1x8x128xf32, #tpu.memory_space<vmem>>, vector<1x8x128xf32>,
    return
  }
  func.func @transform_0(%arg0: i32) -> (i32, i32, i32) {
    %c0_i32 = arith.constant 0 : i32
    %c0_i32_0 = arith.constant 0 : i32
    %c0_i32_1 = arith.constant 0 : i32
    return %arg0, %c0_i32, %c0_i32_0 : i32, i32, i32
  }
  func.func @transform_1(%arg0: i32) -> (i32, i32) {
    %c0_i32 = arith.constant 0 : i32
    %c0_i32_0 = arith.constant 0 : i32
    %c0_i32_1 = arith.constant 0 : i32
    return %c0_i32, %c0_i32_0 : i32, i32
  }
  func.func @transform_2(%arg0: i32) -> (i32, i32) {
    %c0_i32 = arith.constant 0 : i32
    %c0_i32_0 = arith.constant 0 : i32
    %c0_i32_1 = arith.constant 0 : i32
    return %c0_i32, %c0_i32_0 : i32, i32
  }
  func.func @transform_3(%arg0: i32) -> (i32, i32) {
    %c0_i32 = arith.constant 0 : i32
    %c0_i32_0 = arith.constant 0 : i32
    %c0_i32_1 = arith.constant 0 : i32
    return %c0_i32, %c0_i32_0 : i32, i32
  }
  func.func @transform_4(%arg0: i32) -> (i32, i32) {
    %c0_i32 = arith.constant 0 : i32
    %c0_i32_0 = arith.constant 0 : i32
    %c0_i32_1 = arith.constant 0 : i32
    return %c0_i32, %c0_i32_0 : i32, i32
  }
  func.func @transform_5(%arg0: i32) -> (i32, i32) {
    %c0_i32 = arith.constant 0 : i32
    %c0_i32_0 = arith.constant 0 : i32
    %c0_i32_1 = arith.constant 0 : i32
    return %c0_i32, %c0_i32_0 : i32, i32
  }
  func.func @transform_6(%arg0: i32) -> (i32, i32) {
    %c0_i32 = arith.constant 0 : i32
    %c0_i32_0 = arith.constant 0 : i32
    %c0_i32_1 = arith.constant 0 : i32
    return %c0_i32, %c0_i32_0 : i32, i32
  }
  func.func @transform_7(%arg0: i32) -> (i32, i32) {
    %c0_i32 = arith.constant 0 : i32
    %c0_i32_0 = arith.constant 0 : i32
    %c0_i32_1 = arith.constant 0 : i32
    return %c0_i32, %c0_i32_0 : i32, i32
  }
  func.func @transform_8(%arg0: i32) -> (i32, i32) {
    %c0_i32 = arith.constant 0 : i32
    %c0_i32_0 = arith.constant 0 : i32
    %c0_i32_1 = arith.constant 0 : i32
    return %c0_i32, %c0_i32_0 : i32, i32
  }
  func.func @transform_9(%arg0: i32) -> (i32, i32) {
    %c0_i32 = arith.constant 0 : i32
    %c0_i32_0 = arith.constant 0 : i32
    %c0_i32_1 = arith.constant 0 : i32
    return %c0_i32, %c0_i32_0 : i32, i32
  }
  func.func @transform_10(%arg0: i32) -> (i32, i32) {
    %c0_i32 = arith.constant 0 : i32
    %c0_i32_0 = arith.constant 0 : i32
    %c0_i32_1 = arith.constant 0 : i32
    return %c0_i32, %c0_i32_0 : i32, i32
  }
  func.func @transform_11(%arg0: i32) -> (i32, i32, i32) {
    %c0_i32 = arith.constant 0 : i32
    %c0_i32_0 = arith.constant 0 : i32
    %c0_i32_1 = arith.constant 0 : i32
    return %arg0, %c0_i32, %c0_i32_0 : i32, i32, i32
  }
}

module attributes {stable_mosaic.version = 11 : i64} {
  func.func @qattn_kernel(%arg0: i32, %arg1: memref<1x8x128xf32, #tpu.memory_space<vmem>>, %arg2: memref<1x128xf32, #tpu.memory_space<vmem>>, %arg3: memref<1x128xf32, #tpu.memory_space<vmem>>, %arg4: memref<128x128xbf16, #tpu.memory_space<vmem>>, %arg5: memref<128x128xbf16, #tpu.memory_space<vmem>>, %arg6: memref<1x128xf32, #tpu.memory_space<vmem>>, %arg7: memref<1x128xf32, #tpu.memory_space<vmem>>, %arg8: memref<128x128xbf16, #tpu.memory_space<vmem>>, %arg9: memref<1x128xf32, #tpu.memory_space<vmem>>, %arg10: memref<128x128xbf16, #tpu.memory_space<vmem>>, %arg11: memref<1x128xf32, #tpu.memory_space<vmem>>, %arg12: memref<1x8x128xf32, #tpu.memory_space<vmem>>) attributes {dimension_semantics = [#tpu.dimension_semantics<parallel>], iteration_bounds = array<i64: 2>, scalar_prefetch = 0 : i64, scratch_operands = 0 : i64, tpu.core_type = #tpu.core_type<tc>, window_params = [{transform_indices = @transform_0, window_bounds = array<i64: 1, 8, 128>}, {pipeline_mode = #tpu.pipeline_mode<synchronous>, transform_indices = @transform_1, window_bounds = array<i64: 1, 128>}, {pipeline_mode = #tpu.pipeline_mode<synchronous>, transform_indices = @transform_2, window_bounds = array<i64: 1, 128>}, {pipeline_mode = #tpu.pipeline_mode<synchronous>, transform_indices = @transform_3, window_bounds = array<i64: 128, 128>}, {pipeline_mode = #tpu.pipeline_mode<synchronous>, transform_indices = @transform_4, window_bounds = array<i64: 128, 128>}, {pipeline_mode = #tpu.pipeline_mode<synchronous>, transform_indices = @transform_5, window_bounds = array<i64: 1, 128>}, {pipeline_mode = #tpu.pipeline_mode<synchronous>, transform_indices = @transform_6, window_bounds = array<i64: 1, 128>}, {pipeline_mode = #tpu.pipeline_mode<synchronous>, transform_indices = @transform_7, window_bounds = array<i64: 128, 128>}, {pipeline_mode = #tpu.pipeline_mode<synchronous>, transform_indices = @transform_8, window_bounds = array<i64: 1, 128>}, {pipeline_mode = #tpu.pipeline_mode<synchronous>, transform_indices = @transform_9, window_bounds = array<i64: 128, 128>}, {pipeline_mode = #tpu.pipeline_mode<synchronous>, transform_indices = @transform_10, window_bounds = array<i64: 1, 128>}, {transform_indices = @transform_11, window_bounds = array<i64: 1, 8, 128>}]} {
    %c0 = arith.constant 0 : index
    %c0_0 = arith.constant 0 : index
    %c0_1 = arith.constant 0 : index
    %0 = vector.load %arg1[%c0, %c0_0, %c0_1] : memref<1x8x128xf32, #tpu.memory_space<vmem>>, vector<1x8x128xf32>
    %1 = tpu.iota {dimensions = array<i32: 1>} : vector<1x128xi32>
    %c8_i32 = arith.constant 8 : i32
    %2 = vector.broadcast %c8_i32 : i32 to vector<1x128xi32>
    %3 = arith.cmpi slt, %1, %2 : vector<1x128xi32>
    %4 = arith.extui %3 : vector<1x128xi1> to vector<1x128xi32>
    %5 = arith.sitofp %4 : vector<1x128xi32> to vector<1x128xf32>
    %6 = vector.shape_cast %0 : vector<1x8x128xf32> to vector<8x128xf32>
    %c0_2 = arith.constant 0 : index
    %c0_3 = arith.constant 0 : index
    %7 = vector.load %arg2[%c0_2, %c0_3] : memref<1x128xf32, #tpu.memory_space<vmem>>, vector<1x128xf32>
    %c0_4 = arith.constant 0 : index
    %c0_5 = arith.constant 0 : index
    %8 = vector.load %arg3[%c0_4, %c0_5] : memref<1x128xf32, #tpu.memory_space<vmem>>, vector<1x128xf32>
    %cst = arith.constant dense<0.000000e+00> : vector<8xf32>
    %9 = vector.multi_reduction <add>, %6, %cst [1] : vector<8x128xf32> to vector<8xf32>
    %10 = vector.shape_cast %9 : vector<8xf32> to vector<8x1xf32>
    %cst_6 = arith.constant 1.250000e-01 : f32
    %11 = vector.broadcast %cst_6 : f32 to vector<8x1xf32>
    %12 = arith.mulf %10, %11 : vector<8x1xf32>
    %13 = vector.broadcast %12 : vector<8x1xf32> to vector<8x128xf32>
    %14 = arith.subf %6, %13 : vector<8x128xf32>
    %15 = vector.broadcast %5 : vector<1x128xf32> to vector<8x128xf32>
    %16 = arith.mulf %14, %15 : vector<8x128xf32>
    %17 = arith.mulf %16, %16 : vector<8x128xf32>
    %cst_7 = arith.constant dense<0.000000e+00> : vector<8xf32>
    %18 = vector.multi_reduction <add>, %17, %cst_7 [1] : vector<8x128xf32> to vector<8xf32>
    %19 = vector.shape_cast %18 : vector<8xf32> to vector<8x1xf32>
    %cst_8 = arith.constant 1.250000e-01 : f32
    %20 = vector.broadcast %cst_8 : f32 to vector<8x1xf32>
    %21 = arith.mulf %19, %20 : vector<8x1xf32>
    %cst_9 = arith.constant 9.99999974E-6 : f32
    %22 = vector.broadcast %cst_9 : f32 to vector<8x1xf32>
    %23 = arith.addf %21, %22 : vector<8x1xf32>
    %24 = math.rsqrt %23 : vector<8x1xf32>
    %25 = vector.broadcast %24 : vector<8x1xf32> to vector<8x128xf32>
    %26 = arith.mulf %16, %25 : vector<8x128xf32>
    %27 = vector.broadcast %7 : vector<1x128xf32> to vector<8x128xf32>
    %28 = arith.mulf %26, %27 : vector<8x128xf32>
    %29 = vector.broadcast %8 : vector<1x128xf32> to vector<8x128xf32>
    %30 = arith.addf %28, %29 : vector<8x128xf32>
    %31 = vector.shape_cast %30 : vector<8x128xf32> to vector<1x8x128xf32>
    %32 = arith.mulf %31, %31 : vector<1x8x128xf32>
    %cst_10 = arith.constant dense<0.000000e+00> : vector<1x128xf32>
    %33 = vector.multi_reduction <add>, %32, %cst_10 [1] : vector<1x8x128xf32> to vector<1x128xf32>
    %34 = vector.shape_cast %33 : vector<1x128xf32> to vector<1x1x128xf32>
    %cst_11 = arith.constant 8.000000e-04 : f32
    %35 = vector.broadcast %cst_11 : f32 to vector<1x1x128xf32>
    %36 = arith.addf %34, %35 : vector<1x1x128xf32>
    %cst_12 = arith.constant 9.99999993E-9 : f32
    %37 = vector.broadcast %cst_12 : f32 to vector<1x1x128xf32>
    %38 = arith.addf %36, %37 : vector<1x1x128xf32>
    %39 = math.rsqrt %38 : vector<1x1x128xf32>
    %40 = vector.broadcast %39 : vector<1x1x128xf32> to vector<1x8x128xf32>
    %41 = arith.mulf %31, %40 : vector<1x8x128xf32>
    %42 = arith.truncf %41 : vector<1x8x128xf32> to vector<1x8x128xbf16>
    %43 = vector.shape_cast %42 : vector<1x8x128xbf16> to vector<8x128xbf16>
    %c0_13 = arith.constant 0 : index
    %c0_14 = arith.constant 0 : index
    %44 = vector.load %arg4[%c0_13, %c0_14] : memref<128x128xbf16, #tpu.memory_space<vmem>>, vector<128x128xbf16>
    "tpu.trace_start"() <{level = 10 : i32, message = "nd,de->ne"}> : () -> ()
    %cst_15 = arith.constant dense<0.000000e+00> : vector<8x128xf32>
    %45 = tpu.matmul %43, %44, %cst_15 {dimension_numbers = #tpu.dot_dimension_numbers<[1], [0], [0], [1], [0, 0, 1, 1], [], []>} : vector<8x128xbf16>, vector<128x128xbf16>, vector<8x128xf32> -> vector<8x128xf32>
    "tpu.trace_stop"() : () -> ()
    %46 = arith.mulf %45, %45 : vector<8x128xf32>
    %cst_16 = arith.constant 9.99999993E-9 : f32
    %47 = vector.broadcast %cst_16 : f32 to vector<8x128xf32>
    %48 = arith.addf %46, %47 : vector<8x128xf32>
    %49 = math.sqrt %48 : vector<8x128xf32>
    %50 = vector.broadcast %5 : vector<1x128xf32> to vector<8x128xf32>
    %51 = arith.mulf %49, %50 : vector<8x128xf32>
    %52 = vector.shape_cast %51 : vector<8x128xf32> to vector<1x8x128xf32>
    %c0_17 = arith.constant 0 : index
    %c0_18 = arith.constant 0 : index
    %53 = vector.load %arg5[%c0_17, %c0_18] : memref<128x128xbf16, #tpu.memory_space<vmem>>, vector<128x128xbf16>
    "tpu.trace_start"() <{level = 10 : i32, message = "nd,de->ne"}> : () -> ()
    %cst_19 = arith.constant dense<0.000000e+00> : vector<8x128xf32>
    %54 = tpu.matmul %43, %53, %cst_19 {dimension_numbers = #tpu.dot_dimension_numbers<[1], [0], [0], [1], [0, 0, 1, 1], [], []>} : vector<8x128xbf16>, vector<128x128xbf16>, vector<8x128xf32> -> vector<8x128xf32>
    "tpu.trace_stop"() : () -> ()
    %55 = vector.shape_cast %54 : vector<8x128xf32> to vector<1x8x128xf32>
    %56 = arith.truncf %55 : vector<1x8x128xf32> to vector<1x8x128xbf16>
    "tpu.trace_start"() <{level = 10 : i32, message = "bne,bme->bnm"}> : () -> ()
    %cst_20 = arith.constant dense<0.000000e+00> : vector<1x8x8xf32>
    %57 = tpu.matmul %56, %42, %cst_20 {dimension_numbers = #tpu.dot_dimension_numbers<[2], [2], [1], [1], [0, 0, 0, 1, 1, 1], [0], [0]>} : vector<1x8x128xbf16>, vector<1x8x128xbf16>, vector<1x8x8xf32> -> vector<1x8x8xf32>
    "tpu.trace_stop"() : () -> ()
    %58 = arith.mulf %57, %57 : vector<1x8x8xf32>
    %cst_21 = arith.constant 9.99999993E-9 : f32
    %59 = vector.broadcast %cst_21 : f32 to vector<1x8x8xf32>
    %60 = arith.addf %58, %59 : vector<1x8x8xf32>
    %61 = math.sqrt %60 : vector<1x8x8xf32>
    %cst_22 = arith.constant dense<0xFF800000> : vector<1x8xf32>
    %62 = vector.multi_reduction <maximumf>, %61, %cst_22 [2] : vector<1x8x8xf32> to vector<1x8xf32>
    %63 = vector.shape_cast %62 : vector<1x8xf32> to vector<1x8x1xf32>
    %64 = vector.broadcast %63 : vector<1x8x1xf32> to vector<1x8x8xf32>
    %65 = arith.subf %61, %64 : vector<1x8x8xf32>
    %66 = math.exp %65 : vector<1x8x8xf32>
    %cst_23 = arith.constant dense<0.000000e+00> : vector<1x8xf32>
    %67 = vector.multi_reduction <add>, %66, %cst_23 [2] : vector<1x8x8xf32> to vector<1x8xf32>
    %68 = vector.shape_cast %67 : vector<1x8xf32> to vector<1x8x1xf32>
    %69 = vector.broadcast %68 : vector<1x8x1xf32> to vector<1x8x8xf32>
    %70 = arith.divf %66, %69 : vector<1x8x8xf32>
    %71 = arith.truncf %70 : vector<1x8x8xf32> to vector<1x8x8xbf16>
    %72 = arith.truncf %52 : vector<1x8x128xf32> to vector<1x8x128xbf16>
    "tpu.trace_start"() <{level = 10 : i32, message = "bnm,bmd->bnd"}> : () -> ()
    %cst_24 = arith.constant dense<0.000000e+00> : vector<1x8x128xf32>
    %73 = tpu.matmul %71, %72, %cst_24 {dimension_numbers = #tpu.dot_dimension_numbers<[2], [1], [1], [2], [0, 0, 0, 1, 1, 2], [0], [0]>} : vector<1x8x8xbf16>, vector<1x8x128xbf16>, vector<1x8x128xf32> -> vector<1x8x128xf32>
    "tpu.trace_stop"() : () -> ()
    %74 = arith.addf %0, %73 : vector<1x8x128xf32>
    %75 = vector.shape_cast %74 : vector<1x8x128xf32> to vector<8x128xf32>
    %c0_25 = arith.constant 0 : index
    %c0_26 = arith.constant 0 : index
    %76 = vector.load %arg6[%c0_25, %c0_26] : memref<1x128xf32, #tpu.memory_space<vmem>>, vector<1x128xf32>
    %c0_27 = arith.constant 0 : index
    %c0_28 = arith.constant 0 : index
    %77 = vector.load %arg7[%c0_27, %c0_28] : memref<1x128xf32, #tpu.memory_space<vmem>>, vector<1x128xf32>
    %cst_29 = arith.constant dense<0.000000e+00> : vector<8xf32>
    %78 = vector.multi_reduction <add>, %75, %cst_29 [1] : vector<8x128xf32> to vector<8xf32>
    %79 = vector.shape_cast %78 : vector<8xf32> to vector<8x1xf32>
    %cst_30 = arith.constant 1.250000e-01 : f32
    %80 = vector.broadcast %cst_30 : f32 to vector<8x1xf32>
    %81 = arith.mulf %79, %80 : vector<8x1xf32>
    %82 = vector.broadcast %81 : vector<8x1xf32> to vector<8x128xf32>
    %83 = arith.subf %75, %82 : vector<8x128xf32>
    %84 = vector.broadcast %5 : vector<1x128xf32> to vector<8x128xf32>
    %85 = arith.mulf %83, %84 : vector<8x128xf32>
    %86 = arith.mulf %85, %85 : vector<8x128xf32>
    %cst_31 = arith.constant dense<0.000000e+00> : vector<8xf32>
    %87 = vector.multi_reduction <add>, %86, %cst_31 [1] : vector<8x128xf32> to vector<8xf32>
    %88 = vector.shape_cast %87 : vector<8xf32> to vector<8x1xf32>
    %cst_32 = arith.constant 1.250000e-01 : f32
    %89 = vector.broadcast %cst_32 : f32 to vector<8x1xf32>
    %90 = arith.mulf %88, %89 : vector<8x1xf32>
    %cst_33 = arith.constant 9.99999974E-6 : f32
    %91 = vector.broadcast %cst_33 : f32 to vector<8x1xf32>
    %92 = arith.addf %90, %91 : vector<8x1xf32>
    %93 = math.rsqrt %92 : vector<8x1xf32>
    %94 = vector.broadcast %93 : vector<8x1xf32> to vector<8x128xf32>
    %95 = arith.mulf %85, %94 : vector<8x128xf32>
    %96 = vector.broadcast %76 : vector<1x128xf32> to vector<8x128xf32>
    %97 = arith.mulf %95, %96 : vector<8x128xf32>
    %98 = vector.broadcast %77 : vector<1x128xf32> to vector<8x128xf32>
    %99 = arith.addf %97, %98 : vector<8x128xf32>
    %100 = arith.truncf %99 : vector<8x128xf32> to vector<8x128xbf16>
    %c0_34 = arith.constant 0 : index
    %c0_35 = arith.constant 0 : index
    %101 = vector.load %arg8[%c0_34, %c0_35] : memref<128x128xbf16, #tpu.memory_space<vmem>>, vector<128x128xbf16>
    "tpu.trace_start"() <{level = 10 : i32, message = "nd,dh->nh"}> : () -> ()
    %cst_36 = arith.constant dense<0.000000e+00> : vector<8x128xf32>
    %102 = tpu.matmul %100, %101, %cst_36 {dimension_numbers = #tpu.dot_dimension_numbers<[1], [0], [0], [1], [0, 0, 1, 1], [], []>} : vector<8x128xbf16>, vector<128x128xbf16>, vector<8x128xf32> -> vector<8x128xf32>
    "tpu.trace_stop"() : () -> ()
    %c0_37 = arith.constant 0 : index
    %c0_38 = arith.constant 0 : index
    %103 = vector.load %arg9[%c0_37, %c0_38] : memref<1x128xf32, #tpu.memory_space<vmem>>, vector<1x128xf32>
    %104 = vector.broadcast %103 : vector<1x128xf32> to vector<8x128xf32>
    %105 = arith.addf %102, %104 : vector<8x128xf32>
    %cst_39 = arith.constant 5.000000e-01 : f32
    %106 = vector.broadcast %cst_39 : f32 to vector<8x128xf32>
    %107 = arith.mulf %106, %105 : vector<8x128xf32>
    %cst_40 = arith.constant 0.707106769 : f32
    %108 = vector.broadcast %cst_40 : f32 to vector<8x128xf32>
    %109 = arith.mulf %105, %108 : vector<8x128xf32>
    %110 = math.erf %109 : vector<8x128xf32>
    %cst_41 = arith.constant 1.000000e+00 : f32
    %111 = vector.broadcast %cst_41 : f32 to vector<8x128xf32>
    %112 = arith.addf %111, %110 : vector<8x128xf32>
    %113 = arith.mulf %107, %112 : vector<8x128xf32>
    %114 = arith.truncf %113 : vector<8x128xf32> to vector<8x128xbf16>
    %c0_42 = arith.constant 0 : index
    %c0_43 = arith.constant 0 : index
    %115 = vector.load %arg10[%c0_42, %c0_43] : memref<128x128xbf16, #tpu.memory_space<vmem>>, vector<128x128xbf16>
    "tpu.trace_start"() <{level = 10 : i32, message = "nh,hd->nd"}> : () -> ()
    %cst_44 = arith.constant dense<0.000000e+00> : vector<8x128xf32>
    %116 = tpu.matmul %114, %115, %cst_44 {dimension_numbers = #tpu.dot_dimension_numbers<[1], [0], [0], [1], [0, 0, 1, 1], [], []>} : vector<8x128xbf16>, vector<128x128xbf16>, vector<8x128xf32> -> vector<8x128xf32>
    "tpu.trace_stop"() : () -> ()
    %c0_45 = arith.constant 0 : index
    %c0_46 = arith.constant 0 : index
    %117 = vector.load %arg11[%c0_45, %c0_46] : memref<1x128xf32, #tpu.memory_space<vmem>>, vector<1x128xf32>
    %118 = vector.broadcast %117 : vector<1x128xf32> to vector<8x128xf32>
    %119 = arith.addf %116, %118 : vector<8x128xf32>
    %120 = vector.shape_cast %119 : vector<8x128xf32> to vector<1x8x128xf32>
    %121 = arith.addf %74, %120 : vector<1x8x128xf32>
    %c0_47 = arith.constant 0 : index
    %c0_48 = arith.constant 0 : index
    %c0_49 = arith.constant 0 : index
    %122 = vector.load %arg12[%c0_47, %c0_48, %c0_49] : memref<1x8x128xf32, #tpu.memory_space<vmem>>, vector<1x8x128xf32>
    tpu.vector_store %arg12[%c0_47, %c0_48, %c0_49], %121 {strides = array<i32>} : memref<1x8x128xf32, #tpu.memory_space<vmem>>, vector<1x8x128xf32>,
    return
  }
  func.func @transform_0(%arg0: i32) -> (i32, i32, i32) {
    %c0_i32 = arith.constant 0 : i32
    %c0_i32_0 = arith.constant 0 : i32
    %c0_i32_1 = arith.constant 0 : i32
    return %arg0, %c0_i32, %c0_i32_0 : i32, i32, i32
  }
  func.func @transform_1(%arg0: i32) -> (i32, i32) {
    %c0_i32 = arith.constant 0 : i32
    %c0_i32_0 = arith.constant 0 : i32
    %c0_i32_1 = arith.constant 0 : i32
    return %c0_i32, %c0_i32_0 : i32, i32
  }
  func.func @transform_2(%arg0: i32) -> (i32, i32) {
    %c0_i32 = arith.constant 0 : i32
    %c0_i32_0 = arith.constant 0 : i32
    %c0_i32_1 = arith.constant 0 : i32
    return %c0_i32, %c0_i32_0 : i32, i32
  }
  func.func @transform_3(%arg0: i32) -> (i32, i32) {
    %c0_i32 = arith.constant 0 : i32
    %c0_i32_0 = arith.constant 0 : i32
    %c0_i32_1 = arith.constant 0 : i32
    return %c0_i32, %c0_i32_0 : i32, i32
  }
  func.func @transform_4(%arg0: i32) -> (i32, i32) {
    %c0_i32 = arith.constant 0 : i32
    %c0_i32_0 = arith.constant 0 : i32
    %c0_i32_1 = arith.constant 0 : i32
    return %c0_i32, %c0_i32_0 : i32, i32
  }
  func.func @transform_5(%arg0: i32) -> (i32, i32) {
    %c0_i32 = arith.constant 0 : i32
    %c0_i32_0 = arith.constant 0 : i32
    %c0_i32_1 = arith.constant 0 : i32
    return %c0_i32, %c0_i32_0 : i32, i32
  }
  func.func @transform_6(%arg0: i32) -> (i32, i32) {
    %c0_i32 = arith.constant 0 : i32
    %c0_i32_0 = arith.constant 0 : i32
    %c0_i32_1 = arith.constant 0 : i32
    return %c0_i32, %c0_i32_0 : i32, i32
  }
  func.func @transform_7(%arg0: i32) -> (i32, i32) {
    %c0_i32 = arith.constant 0 : i32
    %c0_i32_0 = arith.constant 0 : i32
    %c0_i32_1 = arith.constant 0 : i32
    return %c0_i32, %c0_i32_0 : i32, i32
  }
  func.func @transform_8(%arg0: i32) -> (i32, i32) {
    %c0_i32 = arith.constant 0 : i32
    %c0_i32_0 = arith.constant 0 : i32
    %c0_i32_1 = arith.constant 0 : i32
    return %c0_i32, %c0_i32_0 : i32, i32
  }
  func.func @transform_9(%arg0: i32) -> (i32, i32) {
    %c0_i32 = arith.constant 0 : i32
    %c0_i32_0 = arith.constant 0 : i32
    %c0_i32_1 = arith.constant 0 : i32
    return %c0_i32, %c0_i32_0 : i32, i32
  }
  func.func @transform_10(%arg0: i32) -> (i32, i32) {
    %c0_i32 = arith.constant 0 : i32
    %c0_i32_0 = arith.constant 0 : i32
    %c0_i32_1 = arith.constant 0 : i32
    return %c0_i32, %c0_i32_0 : i32, i32
  }
  func.func @transform_11(%arg0: i32) -> (i32, i32, i32) {
    %c0_i32 = arith.constant 0 : i32
    %c0_i32_0 = arith.constant 0 : i32
    %c0_i32_1 = arith.constant 0 : i32
    return %arg0, %c0_i32, %c0_i32_0 : i32, i32, i32
  }
}

</mosaic_0001>

<llo_original>
// kernel: tpu_custom_call.1
$region0: #{tpu_custom_call.1}
  #allocation0 [shape = 'u32[]', space=smem, size = 0x4, offset = 0x4, fixed_abs, tag = 'smem constant byte address 0x4 - core index']
  #allocation1 [shape = 'u32[144,128]{1,0:T(1,128)}', space=vmem, size = 0x12000, scoped, tag = 'internal scratch']
  %s0 = inlined_call_operand.hbm [shape: f32[2,8,128], index: 0, kind: input, shape index: {}]
  %s1 = inlined_call_operand.vmem [shape: f32[1,128], index: 1, kind: input, shape index: {}]
  %s2 = inlined_call_operand.vmem [shape: f32[1,128], index: 2, kind: input, shape index: {}]
  %s3 = inlined_call_operand.hbm [shape: bf16[128,128], index: 3, kind: input, shape index: {}]
  %s4 = inlined_call_operand.hbm [shape: bf16[128,128], index: 4, kind: input, shape index: {}]
  %s5 = inlined_call_operand.vmem [shape: f32[1,128], index: 5, kind: input, shape index: {}]
  %s6 = inlined_call_operand.vmem [shape: f32[1,128], index: 6, kind: input, shape index: {}]
  %s7 = inlined_call_operand.hbm [shape: bf16[128,128], index: 7, kind: input, shape index: {}]
  %s8 = inlined_call_operand.vmem [shape: f32[1,128], index: 8, kind: input, shape index: {}]
  %s9 = inlined_call_operand.hbm [shape: bf16[128,128], index: 9, kind: input, shape index: {}]
  %s10 = inlined_call_operand.vmem [shape: f32[1,128], index: 10, kind: input, shape index: {}]
  %s11 = inlined_call_operand.hbm [shape: f32[2,8,128], index: 11, kind: output, shape index: {}]
  %s12 = sld [smem:[#allocation0]]
  $region97: #{tpu_custom_call.1} parent=0
    _
  %s14 = ssub.s32 1, %s12
  %s15 = scalar_select 0, %s14, %s12
  $region1: #{tpu_custom_call.1} parent=0
    #allocation2 [shape = 'u8[8192]{0}', space=vmem, size = 0x2000, scoped, tag = 'input window, operand 0']
    #allocation3 [shape = 's32[2]{0}', space=sflag, size = 0x8, scoped, tag = 'scoped memory for tpu_custom_call.1']
    #allocation4 [shape = 's32[2]{0}', space=sflag, size = 0x8, scoped, tag = 'scoped memory for tpu_custom_call.1']
    #allocation5 [shape = 'u8[32768]{0}', space=vmem, size = 0x8000, scoped, tag = 'input window, operand 3, single buffered']
    #allocation6 [shape = 's32[1]{0}', space=sflag, size = 0x4, scoped, tag = 'scoped memory for tpu_custom_call.1']
    #allocation7 [shape = 'u8[32768]{0}', space=vmem, size = 0x8000, scoped, tag = 'input window, operand 4, single buffered']
    #allocation8 [shape = 'u8[32768]{0}', space=vmem, size = 0x8000, scoped, tag = 'input window, operand 7, single buffered']
    #allocation9 [shape = 's32[1]{0}', space=sflag, size = 0x4, scoped, tag = 'scoped memory for tpu_custom_call.1']
    #allocation10 [shape = 'u8[32768]{0}', space=vmem, size = 0x8000, scoped, tag = 'input window, operand 9, single buffered']
    #allocation11 [shape = 'u8[8192]{0}', space=vmem, size = 0x2000, scoped, tag = 'output window, operand 0']
    %16 = vsyncpa [#allocation3], 0
    %s17 = scalar_lea.sflag [#allocation3], 1
    %18 = vsyncpa %s17, 0
    %19 = vsyncpa [#allocation6], 0
    %20 = vsyncpa [#allocation9], 0
    %21 = vsyncpa [#allocation4], 0
    %s22 = scalar_lea.sflag [#allocation4], 1
    %23 = vsyncpa %s22, 0
    loop: start=0, step=1, limit=4
    $region2: #{tpu_custom_call.1} parent=1 // loop_pre_header
      _
    $region3: #{tpu_custom_call.1} parent=1 // loop_header
      %s25 = sphi 0, %s29
      %p26 = scmp.ge.s32.totalorder %s25, 4
      %s35 = sphi 0, %s37
      %s38 = sphi 0, %s35
      %s39 = sphi 0, %s38
      %s55 = sphi 0, %s39
      %s59 = sphi 0, %s59
      %s61 = sphi 0, %s59
      %s62 = sphi 0, %s61
      %s76 = sphi 0, %s62
      %s80 = sphi 0, %s80
      %s82 = sphi 0, %s80
      %s83 = sphi 0, %s82
      %s97 = sphi 0, %s83
      %s101 = sphi 0, %s101
      %s103 = sphi 0, %s101
      %s104 = sphi 0, %s103
      %s118 = sphi 0, %s104
      %s122 = sphi 0, %s122
      %s124 = sphi 0, %s122
      %s125 = sphi 0, %s124
      %s139 = sphi 0, %s125
      %s143 = sphi 0, %s143
      %s145 = sphi 0, %s143
      %s146 = sphi 0, %s145
      %s160 = sphi 0, %s146
      %s164 = sphi 0, %s164
      %s166 = sphi 0, %s164
      %s167 = sphi 0, %s166
      %s181 = sphi 0, %s167
      %s185 = sphi 0, %s185
      %s187 = sphi 0, %s185
      %s188 = sphi 0, %s187
      %s202 = sphi 0, %s188
      %s206 = sphi 0, %s206
      %s208 = sphi 0, %s206
      %s209 = sphi 0, %s208
      %s223 = sphi 0, %s209
      %s227 = sphi 0, %s227
      %s229 = sphi 0, %s227
      %s230 = sphi 0, %s229
      %s244 = sphi 0, %s230
      %s248 = sphi 0, %s248
      %s250 = sphi 0, %s248
      %s251 = sphi 0, %s250
      %s265 = sphi 0, %s251
      %s271 = sphi 0, %s273
      %s274 = sphi 0, %s271
      %s275 = sphi 0, %s274
      %s291 = sphi 0, %s275
    $region4: #{tpu_custom_call.1} parent=1 // loop_header_branch
      %28 = sbr.rel (%p26) target = $region8
    $region5: #{tpu_custom_call.1} parent=1 // loop_body
      %s30 = ssub.s32 %s25, 1
      %s31 = ssub.s32 %s25, 2
      %s32 = sadd.s32 %s25, 1
      %s33 = ssub.s32 %s25, %s32
      %p34 = scmp.eq.s32.totalorder %s33, 0
      %s36 = sadd.s32 %s35, 1
      %s37 = scalar_select %p34, %s35, %s36
      %p40 = pneg %p34
      %p41 = scmp.eq.s32.totalorder %s25, 1
      %p42 = por %p40, %p41
      %p43 = scmp.ne.s32.totalorder %s35, %s38
      %p44 = scmp.eq.s32.totalorder %s25, 0
      %p45 = por %p43, %p44
      %p46 = scmp.ne.s32.totalorder %s35, %s38
      %p47 = scmp.eq.s32.totalorder %s30, 1
      %p48 = por %p46, %p47
      %p49 = scmp.ne.s32.totalorder %s38, %s39
      %p50 = scmp.eq.s32.totalorder %s30, 0
      %p51 = por %p49, %p50
      %p52 = scmp.ne.s32.totalorder %s38, %s39
      %p53 = scmp.eq.s32.totalorder %s31, 1
      %p54 = por %p52, %p53
      %p56 = scmp.ne.s32.totalorder %s39, %s55
      %p57 = scmp.eq.s32.totalorder %s31, 0
      %p58 = por %p56, %p57
      %s60 = sadd.s32 %s59, 1
      %p63 = scmp.eq.s32.totalorder %s25, 1
      %p64 = scmp.ne.s32.totalorder %s59, %s61
      %p65 = scmp.eq.s32.totalorder %s25, 0
      %p66 = por %p64, %p65
      %p67 = scmp.ne.s32.totalorder %s59, %s61
      %p68 = scmp.eq.s32.totalorder %s30, 1
      %p69 = por %p67, %p68
      %p70 = scmp.ne.s32.totalorder %s61, %s62
      %p71 = scmp.eq.s32.totalorder %s30, 0
      %p72 = por %p70, %p71
      %p73 = scmp.ne.s32.totalorder %s61, %s62
      %p74 = scmp.eq.s32.totalorder %s31, 1
      %p75 = por %p73, %p74
      %p77 = scmp.ne.s32.totalorder %s62, %s76
      %p78 = scmp.eq.s32.totalorder %s31, 0
      %p79 = por %p77, %p78
      %s81 = sadd.s32 %s80, 1
      %p84 = scmp.eq.s32.totalorder %s25, 1
      %p85 = scmp.ne.s32.totalorder %s80, %s82
      %p86 = scmp.eq.s32.totalorder %s25, 0
      %p87 = por %p85, %p86
      %p88 = scmp.ne.s32.totalorder %s80, %s82
      %p89 = scmp.eq.s32.totalorder %s30, 1
      %p90 = por %p88, %p89
      %p91 = scmp.ne.s32.totalorder %s82, %s83
      %p92 = scmp.eq.s32.totalorder %s30, 0
      %p93 = por %p91, %p92
      %p94 = scmp.ne.s32.totalorder %s82, %s83
      %p95 = scmp.eq.s32.totalorder %s31, 1
      %p96 = por %p94, %p95
      %p98 = scmp.ne.s32.totalorder %s83, %s97
      %p99 = scmp.eq.s32.totalorder %s31, 0
      %p100 = por %p98, %p99
      %s102 = sadd.s32 %s101, 1
      %p105 = scmp.eq.s32.totalorder %s25, 1
      %p106 = scmp.ne.s32.totalorder %s101, %s103
      %p107 = scmp.eq.s32.totalorder %s25, 0
      %p108 = por %p106, %p107
      %p109 = scmp.ne.s32.totalorder %s101, %s103
      %p110 = scmp.eq.s32.totalorder %s30, 1
      %p111 = por %p109, %p110
      %p112 = scmp.ne.s32.totalorder %s103, %s104
      %p113 = scmp.eq.s32.totalorder %s30, 0
      %p114 = por %p112, %p113
      %p115 = scmp.ne.s32.totalorder %s103, %s104
      %p116 = scmp.eq.s32.totalorder %s31, 1
      %p117 = por %p115, %p116
      %p119 = scmp.ne.s32.totalorder %s104, %s118
      %p120 = scmp.eq.s32.totalorder %s31, 0
      %p121 = por %p119, %p120
      %s123 = sadd.s32 %s122, 1
      %p126 = scmp.eq.s32.totalorder %s25, 1
      %p127 = scmp.ne.s32.totalorder %s122, %s124
      %p128 = scmp.eq.s32.totalorder %s25, 0
      %p129 = por %p127, %p128
      %p130 = scmp.ne.s32.totalorder %s122, %s124
      %p131 = scmp.eq.s32.totalorder %s30, 1
      %p132 = por %p130, %p131
      %p133 = scmp.ne.s32.totalorder %s124, %s125
      %p134 = scmp.eq.s32.totalorder %s30, 0
      %p135 = por %p133, %p134
      %p136 = scmp.ne.s32.totalorder %s124, %s125
      %p137 = scmp.eq.s32.totalorder %s31, 1
      %p138 = por %p136, %p137
      %p140 = scmp.ne.s32.totalorder %s125, %s139
      %p141 = scmp.eq.s32.totalorder %s31, 0
      %p142 = por %p140, %p141
      %s144 = sadd.s32 %s143, 1
      %p147 = scmp.eq.s32.totalorder %s25, 1
      %p148 = scmp.ne.s32.totalorder %s143, %s145
      %p149 = scmp.eq.s32.totalorder %s25, 0
      %p150 = por %p148, %p149
      %p151 = scmp.ne.s32.totalorder %s143, %s145
      %p152 = scmp.eq.s32.totalorder %s30, 1
      %p153 = por %p151, %p152
      %p154 = scmp.ne.s32.totalorder %s145, %s146
      %p155 = scmp.eq.s32.totalorder %s30, 0
      %p156 = por %p154, %p155
      %p157 = scmp.ne.s32.totalorder %s145, %s146
      %p158 = scmp.eq.s32.totalorder %s31, 1
      %p159 = por %p157, %p158
      %p161 = scmp.ne.s32.totalorder %s146, %s160
      %p162 = scmp.eq.s32.totalorder %s31, 0
      %p163 = por %p161, %p162
      %s165 = sadd.s32 %s164, 1
      %p168 = scmp.eq.s32.totalorder %s25, 1
      %p169 = scmp.ne.s32.totalorder %s164, %s166
      %p170 = scmp.eq.s32.totalorder %s25, 0
      %p171 = por %p169, %p170
      %p172 = scmp.ne.s32.totalorder %s164, %s166
      %p173 = scmp.eq.s32.totalorder %s30, 1
      %p174 = por %p172, %p173
      %p175 = scmp.ne.s32.totalorder %s166, %s167
      %p176 = scmp.eq.s32.totalorder %s30, 0
      %p177 = por %p175, %p176
      %p178 = scmp.ne.s32.totalorder %s166, %s167
      %p179 = scmp.eq.s32.totalorder %s31, 1
      %p180 = por %p178, %p179
      %p182 = scmp.ne.s32.totalorder %s167, %s181
      %p183 = scmp.eq.s32.totalorder %s31, 0
      %p184 = por %p182, %p183
      %s186 = sadd.s32 %s185, 1
      %p189 = scmp.eq.s32.totalorder %s25, 1
      %p190 = scmp.ne.s32.totalorder %s185, %s187
      %p191 = scmp.eq.s32.totalorder %s25, 0
      %p192 = por %p190, %p191
      %p193 = scmp.ne.s32.totalorder %s185, %s187
      %p194 = scmp.eq.s32.totalorder %s30, 1
      %p195 = por %p193, %p194
      %p196 = scmp.ne.s32.totalorder %s187, %s188
      %p197 = scmp.eq.s32.totalorder %s30, 0
      %p198 = por %p196, %p197
      %p199 = scmp.ne.s32.totalorder %s187, %s188
      %p200 = scmp.eq.s32.totalorder %s31, 1
      %p201 = por %p199, %p200
      %p203 = scmp.ne.s32.totalorder %s188, %s202
      %p204 = scmp.eq.s32.totalorder %s31, 0
      %p205 = por %p203, %p204
      %s207 = sadd.s32 %s206, 1
      %p210 = scmp.eq.s32.totalorder %s25, 1
      %p211 = scmp.ne.s32.totalorder %s206, %s208
      %p212 = scmp.eq.s32.totalorder %s25, 0
      %p213 = por %p211, %p212
      %p214 = scmp.ne.s32.totalorder %s206, %s208
      %p215 = scmp.eq.s32.totalorder %s30, 1
      %p216 = por %p214, %p215
      %p217 = scmp.ne.s32.totalorder %s208, %s209
      %p218 = scmp.eq.s32.totalorder %s30, 0
      %p219 = por %p217, %p218
      %p220 = scmp.ne.s32.totalorder %s208, %s209
      %p221 = scmp.eq.s32.totalorder %s31, 1
      %p222 = por %p220, %p221
      %p224 = scmp.ne.s32.totalorder %s209, %s223
      %p225 = scmp.eq.s32.totalorder %s31, 0
      %p226 = por %p224, %p225
      %s228 = sadd.s32 %s227, 1
      %p231 = scmp.eq.s32.totalorder %s25, 1
      %p232 = scmp.ne.s32.totalorder %s227, %s229
      %p233 = scmp.eq.s32.totalorder %s25, 0
      %p234 = por %p232, %p233
      %p235 = scmp.ne.s32.totalorder %s227, %s229
      %p236 = scmp.eq.s32.totalorder %s30, 1
      %p237 = por %p235, %p236
      %p238 = scmp.ne.s32.totalorder %s229, %s230
      %p239 = scmp.eq.s32.totalorder %s30, 0
      %p240 = por %p238, %p239
      %p241 = scmp.ne.s32.totalorder %s229, %s230
      %p242 = scmp.eq.s32.totalorder %s31, 1
      %p243 = por %p241, %p242
      %p245 = scmp.ne.s32.totalorder %s230, %s244
      %p246 = scmp.eq.s32.totalorder %s31, 0
      %p247 = por %p245, %p246
      %s249 = sadd.s32 %s248, 1
      %p252 = scmp.eq.s32.totalorder %s25, 1
      %p253 = scmp.ne.s32.totalorder %s248, %s250
      %p254 = scmp.eq.s32.totalorder %s25, 0
      %p255 = por %p253, %p254
      %p256 = scmp.ne.s32.totalorder %s248, %s250
      %p257 = scmp.eq.s32.totalorder %s30, 1
      %p258 = por %p256, %p257
      %p259 = scmp.ne.s32.totalorder %s250, %s251
      %p260 = scmp.eq.s32.totalorder %s30, 0
      %p261 = por %p259, %p260
      %p262 = scmp.ne.s32.totalorder %s250, %s251
      %p263 = scmp.eq.s32.totalorder %s31, 1
      %p264 = por %p262, %p263
      %p266 = scmp.ne.s32.totalorder %s251, %s265
      %p267 = scmp.eq.s32.totalorder %s31, 0
      %p268 = por %p266, %p267
      %s269 = ssub.s32 %s25, %s32
      %p270 = scmp.eq.s32.totalorder %s269, 0
      %s272 = sadd.s32 %s271, 1
      %s273 = scalar_select %p270, %s271, %s272
      %p276 = pneg %p270
      %p277 = scmp.eq.s32.totalorder %s25, 1
      %p278 = por %p276, %p277
      %p279 = scmp.ne.s32.totalorder %s271, %s274
      %p280 = scmp.eq.s32.totalorder %s25, 0
      %p281 = por %p279, %p280
      %p282 = scmp.ne.s32.totalorder %s271, %s274
      %p283 = scmp.eq.s32.totalorder %s30, 1
      %p284 = por %p282, %p283
      %p285 = scmp.ne.s32.totalorder %s274, %s275
      %p286 = scmp.eq.s32.totalorder %s30, 0
      %p287 = por %p285, %p286
      %p288 = scmp.ne.s32.totalorder %s274, %s275
      %p289 = scmp.eq.s32.totalorder %s31, 1
      %p290 = por %p288, %p289
      %p292 = scmp.ne.s32.totalorder %s275, %s291
      %p293 = scmp.eq.s32.totalorder %s31, 0
      %p294 = por %p292, %p293
      %p295 = scmp.le.s32.totalorder 1, %s25
      %p296 = scmp.lt.s32.totalorder %s25, 3
      %p297 = pnand %p295, %p296
      %p298 = pneg %p297
      // Predicated region
      $region9: #{tpu_custom_call.1} parent=5 // pred_check
        _
      $region10: #{tpu_custom_call.1} parent=5 // pred_check_branch
        %300 = sbr.rel (%p297) target = $region12
      $region11: #{tpu_custom_call.1} parent=5 // pred_region
        %s301 = ssub.s32 %s25, 1
        // Predicated region
        $region13: #{tpu_custom_call.1} parent=11 // pred_check
          %p302 = pneg %p72
        $region14: #{tpu_custom_call.1} parent=11 // pred_check_branch
          %304 = sbr.rel (%p302) target = $region16
        $region15: #{tpu_custom_call.1} parent=11 // pred_region
          _
        $region16: #{tpu_custom_call.1} parent=11 // pred_fallthru
          _
        // Predicated region
        $region17: #{tpu_custom_call.1} parent=11 // pred_check
          %p305 = pneg %p93
        $region18: #{tpu_custom_call.1} parent=11 // pred_check_branch
          %307 = sbr.rel (%p305) target = $region20
        $region19: #{tpu_custom_call.1} parent=11 // pred_region
          _
        $region20: #{tpu_custom_call.1} parent=11 // pred_fallthru
          _
        // Predicated region
        $region21: #{tpu_custom_call.1} parent=11 // pred_check
          %p308 = pneg %p114
        $region22: #{tpu_custom_call.1} parent=11 // pred_check_branch
          %310 = sbr.rel (%p308) target = $region24
        $region23: #{tpu_custom_call.1} parent=11 // pred_region
          %s312 = ssub.s32 1024, 1024
          %313 = vsyncadd [#allocation6], %s312
          %s314 = sshll.u32 [#allocation5], 4
          %s315 = int_to_ptr.vmem [resolvable:$true] %s314
          %320 = dma.hbm_to_vmem [thread:$0]  %s3, 1024, %s315, [#allocation6], 64, 64, 4
        $region24: #{tpu_custom_call.1} parent=11 // pred_fallthru
          _
        // Predicated region
        $region25: #{tpu_custom_call.1} parent=11 // pred_check
          %p321 = pneg %p135
        $region26: #{tpu_custom_call.1} parent=11 // pred_check_branch
          %323 = sbr.rel (%p321) target = $region28
        $region27: #{tpu_custom_call.1} parent=11 // pred_region
          %s325 = ssub.s32 1024, 1024
          %326 = vsyncadd [#allocation6], %s325
          %s327 = sshll.u32 [#allocation7], 4
          %s328 = int_to_ptr.vmem [resolvable:$true] %s327
          %333 = dma.hbm_to_vmem [thread:$0]  %s4, 1024, %s328, [#allocation6], 64, 64, 4
        $region28: #{tpu_custom_call.1} parent=11 // pred_fallthru
          _
        // Predicated region
        $region29: #{tpu_custom_call.1} parent=11 // pred_check
          %p334 = pneg %p156
        $region30: #{tpu_custom_call.1} parent=11 // pred_check_branch
          %336 = sbr.rel (%p334) target = $region32
        $region31: #{tpu_custom_call.1} parent=11 // pred_region
          _
        $region32: #{tpu_custom_call.1} parent=11 // pred_fallthru
          _
        // Predicated region
        $region33: #{tpu_custom_call.1} parent=11 // pred_check
          %p337 = pneg %p177
        $region34: #{tpu_custom_call.1} parent=11 // pred_check_branch
          %339 = sbr.rel (%p337) target = $region36
        $region35: #{tpu_custom_call.1} parent=11 // pred_region
          _
        $region36: #{tpu_custom_call.1} parent=11 // pred_fallthru
          _
        // Predicated region
        $region37: #{tpu_custom_call.1} parent=11 // pred_check
          %p340 = pneg %p198
        $region38: #{tpu_custom_call.1} parent=11 // pred_check_branch
          %342 = sbr.rel (%p340) target = $region40
        $region39: #{tpu_custom_call.1} parent=11 // pred_region
          %s344 = ssub.s32 1024, 1024
          %345 = vsyncadd [#allocation9], %s344
          %s346 = sshll.u32 [#allocation8], 4
          %s347 = int_to_ptr.vmem [resolvable:$true] %s346
          %352 = dma.hbm_to_vmem [thread:$0]  %s7, 1024, %s347, [#allocation9], 64, 64, 4
        $region40: #{tpu_custom_call.1} parent=11 // pred_fallthru
          _
        // Predicated region
        $region41: #{tpu_custom_call.1} parent=11 // pred_check
          %p353 = pneg %p219
        $region42: #{tpu_custom_call.1} parent=11 // pred_check_branch
          %355 = sbr.rel (%p353) target = $region44
        $region43: #{tpu_custom_call.1} parent=11 // pred_region
          _
        $region44: #{tpu_custom_call.1} parent=11 // pred_fallthru
          _
        // Predicated region
        $region45: #{tpu_custom_call.1} parent=11 // pred_check
          %p356 = pneg %p240
        $region46: #{tpu_custom_call.1} parent=11 // pred_check_branch
          %358 = sbr.rel (%p356) target = $region48
        $region47: #{tpu_custom_call.1} parent=11 // pred_region
          %s360 = ssub.s32 1024, 1024
          %361 = vsyncadd [#allocation9], %s360
          %s362 = sshll.u32 [#allocation10], 4
          %s363 = int_to_ptr.vmem [resolvable:$true] %s362
          %368 = dma.hbm_to_vmem [thread:$0]  %s9, 1024, %s363, [#allocation9], 64, 64, 4
        $region48: #{tpu_custom_call.1} parent=11 // pred_fallthru
          _
        // Predicated region
        $region49: #{tpu_custom_call.1} parent=11 // pred_check
          %p369 = pneg %p261
        $region50: #{tpu_custom_call.1} parent=11 // pred_check_branch
          %371 = sbr.rel (%p369) target = $region52
        $region51: #{tpu_custom_call.1} parent=11 // pred_region
          _
        $region52: #{tpu_custom_call.1} parent=11 // pred_fallthru
          _
      $region12: #{tpu_custom_call.1} parent=5 // pred_fallthru
        _
      %p372 = scmp.lt.s32.totalorder %s25, 2
      // Predicated region
      $region53: #{tpu_custom_call.1} parent=5 // pred_check
        %p373 = pneg %p372
      $region54: #{tpu_custom_call.1} parent=5 // pred_check_branch
        %375 = sbr.rel (%p373) target = $region56
      $region55: #{tpu_custom_call.1} parent=5 // pred_region
        // Predicated region
        $region57: #{tpu_custom_call.1} parent=55 // pred_check
          %p376 = pneg %p45
        $region58: #{tpu_custom_call.1} parent=55 // pred_check_branch
          %378 = sbr.rel (%p376) target = $region60
        $region59: #{tpu_custom_call.1} parent=55 // pred_region
          %s379 = sand.u32 %s35, 1
          %s380 = scalar_lea.sflag [#allocation3], %s379
          %s381 = sand.u32 %s35, 1
          %s382 = smul.addr %s381, 8
          %s383 = scalar_lea.vmem [#allocation2], %s382
          %s385 = ssub.s32 128, 128
          %386 = vsyncadd %s380, %s385
          %s387 = smul.addr %s25, 128
          %s388 = scalar_lea.hbm %s0, %s387
          %s390 = sshll.u32 %s383, 4
          %s391 = int_to_ptr.vmem [resolvable:$true] %s390
          %393 = dma.hbm_to_vmem [thread:$0]  %s388, 128, %s391, %s380
        $region60: #{tpu_custom_call.1} parent=55 // pred_fallthru
          _
      $region56: #{tpu_custom_call.1} parent=5 // pred_fallthru
        _
      %p394 = scmp.le.s32.totalorder 1, %s25
      %p395 = scmp.lt.s32.totalorder %s25, 3
      %p396 = pnand %p394, %p395
      %p397 = pneg %p396
      // Predicated region
      $region61: #{tpu_custom_call.1} parent=5 // pred_check
        _
      $region62: #{tpu_custom_call.1} parent=5 // pred_check_branch
        %399 = sbr.rel (%p396) target = $region64
      $region63: #{tpu_custom_call.1} parent=5 // pred_region
        %s400 = ssub.s32 %s25, 1
        %s401 = sand.u32 %s38, 1
        %s402 = scalar_lea.sflag [#allocation3], %s401
        %s403 = sand.u32 %s38, 1
        %s404 = smul.addr %s403, 8
        %s405 = scalar_lea.vmem [#allocation2], %s404
        // Predicated region
        $region65: #{tpu_custom_call.1} parent=63 // pred_check
          %p406 = pneg %p51
        $region66: #{tpu_custom_call.1} parent=63 // pred_check_branch
          %408 = sbr.rel (%p406) target = $region68
        $region67: #{tpu_custom_call.1} parent=63 // pred_region
          %409 = dma.done %s402, 128
        $region68: #{tpu_custom_call.1} parent=63 // pred_fallthru
          _
        // Predicated region
        $region69: #{tpu_custom_call.1} parent=63 // pred_check
          %p410 = pneg %p114
        $region70: #{tpu_custom_call.1} parent=63 // pred_check_branch
          %412 = sbr.rel (%p410) target = $region72
        $region71: #{tpu_custom_call.1} parent=63 // pred_region
          %413 = dma.done [#allocation6], 1024
        $region72: #{tpu_custom_call.1} parent=63 // pred_fallthru
          _
        // Predicated region
        $region73: #{tpu_custom_call.1} parent=63 // pred_check
          %p414 = pneg %p135
        $region74: #{tpu_custom_call.1} parent=63 // pred_check_branch
          %416 = sbr.rel (%p414) target = $region76
        $region75: #{tpu_custom_call.1} parent=63 // pred_region
          %417 = dma.done [#allocation6], 1024
        $region76: #{tpu_custom_call.1} parent=63 // pred_fallthru
          _
        // Predicated region
        $region77: #{tpu_custom_call.1} parent=63 // pred_check
          %p418 = pneg %p198
        $region78: #{tpu_custom_call.1} parent=63 // pred_check_branch
          %420 = sbr.rel (%p418) target = $region80
        $region79: #{tpu_custom_call.1} parent=63 // pred_region
          %421 = dma.done [#allocation9], 1024
        $region80: #{tpu_custom_call.1} parent=63 // pred_fallthru
          _
        // Predicated region
        $region81: #{tpu_custom_call.1} parent=63 // pred_check
          %p422 = pneg %p240
        $region82: #{tpu_custom_call.1} parent=63 // pred_check_branch
          %424 = sbr.rel (%p422) target = $region84
        $region83: #{tpu_custom_call.1} parent=63 // pred_region
          %425 = dma.done [#allocation9], 1024
        $region84: #{tpu_custom_call.1} parent=63 // pred_fallthru
          _
        %s426 = sand.u32 %s38, 1
        %s427 = scalar_lea.sflag [#allocation3], %s426
        %s428 = sand.u32 %s38, 1
        %s429 = smul.addr %s428, 8
        %s430 = scalar_lea.vmem [#allocation2], %s429
        %p431 = pneg %p51
        %p432 = pneg %p48
        %p433 = pneg %p72
        %p434 = pneg %p69
        %p435 = pneg %p93
        %p436 = pneg %p90
        %p437 = pneg %p114
        %p438 = pneg %p111
        %p439 = pneg %p135
        %p440 = pneg %p132
        %p441 = pneg %p156
        %p442 = pneg %p153
        %p443 = pneg %p177
        %p444 = pneg %p174
        %p445 = pneg %p198
        %p446 = pneg %p195
        %p447 = pneg %p219
        %p448 = pneg %p216
        %p449 = pneg %p240
        %p450 = pneg %p237
        %p451 = pneg %p261
        %p452 = pneg %p258
        %p453 = pneg %p287
        %p454 = pneg %p284
        %s455 = sand.u32 %s274, 1
        %s456 = scalar_lea.sflag [#allocation4], %s455
        %s457 = sand.u32 %s274, 1
        %s458 = smul.addr %s457, 8
        %s459 = scalar_lea.vmem [#allocation11], %s458
        %v461 = vld [vmem:[%s405] sm:$0xff]
        %v462 = vlaneseq
        %v463 = vand.u32 %v462, 127
        %vm464 = vcmp.lt.s32.totalorder %v463, 8
        %v465 = vsel %vm464, 1, 0
        %v466 = vcvt.s32.f32 %v465
        %v467 = vld [vmem:[%s1] sm:$0x1]
        %v468 = vld [vmem:[%s2] sm:$0x1]
        %469 = vadd.xlane.f32.xlu0 %v461
        %v470 = vpop.xlane.xlu0 %469
        %v471 = vmul.f32 %v470, 0.125
        %v472 = vsub.f32 %v461, %v471
        %v473 = vmul.f32 %v472, %v466
        %v474 = vmul.f32 %v473, %v473
        %475 = vadd.xlane.f32.xlu0 %v474
        %v476 = vpop.xlane.xlu0 %475
        %v477 = vmul.f32 %v476, 0.125
        %v478 = vadd.f32 %v477, 1e-05
        %v479 = vrsqrt.pop %v478
        %v480 = vmul.f32 %v473, %v479
        %v482 = vlaneseq
        %v483 = vshrl.u32 %v482, 7
        %v484 = vsub.s32 0, %v483
        %v485 = vrot.slane %v467, %v484
        %v487 = vmul.f32 %v480, %v485
        %v489 = vlaneseq
        %v490 = vshrl.u32 %v489, 7
        %v491 = vsub.s32 0, %v490
        %v492 = vrot.slane %v468, %v491
        %v494 = vadd.f32 %v487, %v492
        %v495 = vmul.f32 %v494, %v494
        %v496 = vrot.slane %v495, 4
        %v497 = vadd.f32 %v495, %v496
        %v498 = vrot.slane %v497, 2
        %v499 = vadd.f32 %v497, %v498
        %v500 = vrot.slane %v499, 1
        %v501 = vadd.f32 %v499, %v500
        %v502 = vadd.f32 %v501, 0.0008
        %v503 = vadd.f32 %v502, 1e-08
        %v504 = vrsqrt.pop %v503
        %v505 = vmul.f32 %v494, %v504
        %v506 = vpack.c.bf16 %v505, %v505
        %v507 = vld [vmem:[#allocation5] sm:$0xf]
        %v508 = vld [vmem:[#allocation5 + $0x4] sm:$0xf]
        %v509 = vld [vmem:[#allocation5 + $0x8] sm:$0xf]
        %v510 = vld [vmem:[#allocation5 + $0xc] sm:$0xf]
        %v511 = vld [vmem:[#allocation5 + $0x10] sm:$0xf]
        %v512 = vld [vmem:[#allocation5 + $0x14] sm:$0xf]
        %v513 = vld [vmem:[#allocation5 + $0x18] sm:$0xf]
        %v514 = vld [vmem:[#allocation5 + $0x1c] sm:$0xf]
        %v515 = vld [vmem:[#allocation5 + $0x20] sm:$0xf]
        %v516 = vld [vmem:[#allocation5 + $0x24] sm:$0xf]
        %v517 = vld [vmem:[#allocation5 + $0x28] sm:$0xf]
        %v518 = vld [vmem:[#allocation5 + $0x2c] sm:$0xf]
        %v519 = vld [vmem:[#allocation5 + $0x30] sm:$0xf]
        %v520 = vld [vmem:[#allocation5 + $0x34] sm:$0xf]
        %v521 = vld [vmem:[#allocation5 + $0x38] sm:$0xf]
        %v522 = vld [vmem:[#allocation5 + $0x3c] sm:$0xf]
        %v539 = vunpack.c.l.b16 %v507
        %v540 = vunpack.c.l.b16 %v508
        %v541 = vunpack.c.l.b16 %v509
        %v542 = vunpack.c.l.b16 %v510
        %v543 = vunpack.c.l.b16 %v511
        %v544 = vunpack.c.l.b16 %v512
        %v545 = vunpack.c.l.b16 %v513
        %v546 = vunpack.c.l.b16 %v514
        %v547 = vunpack.c.l.b16 %v515
        %v548 = vunpack.c.l.b16 %v516
        %v549 = vunpack.c.l.b16 %v517
        %v550 = vunpack.c.l.b16 %v518
        %v551 = vunpack.c.l.b16 %v519
        %v552 = vunpack.c.l.b16 %v520
        %v553 = vunpack.c.l.b16 %v521
        %v554 = vunpack.c.l.b16 %v522
        %v555 = vpack.c.b16 %v540, %v539
        %v556 = vpack.c.b16 %v542, %v541
        %v557 = vpack.c.b16 %v544, %v543
        %v558 = vpack.c.b16 %v546, %v545
        %v559 = vpack.c.b16 %v548, %v547
        %v560 = vpack.c.b16 %v550, %v549
        %v561 = vpack.c.b16 %v552, %v551
        %v562 = vpack.c.b16 %v554, %v553
        %571 = vmatprep.subr.bf16.mxu0 0
        %572 = vmatpush1.bf16.msra.mxu0 %v562
        %573 = vmatprep.subr.bf16.mxu0 0
        %574 = vmatpush1.bf16.msra.mxu0 %v561
        %575 = vmatprep.subr.bf16.mxu0 0
        %576 = vmatpush1.bf16.msra.mxu0 %v560
        %577 = vmatprep.subr.bf16.mxu0 0
        %578 = vmatpush1.bf16.msra.mxu0 %v559
        %579 = vmatprep.subr.bf16.mxu0 0
        %580 = vmatpush1.bf16.msra.mxu0 %v558
        %581 = vmatprep.subr.bf16.mxu0 0
        %582 = vmatpush1.bf16.msra.mxu0 %v557
        %583 = vmatprep.subr.bf16.mxu0 0
        %584 = vmatpush1.bf16.msra.mxu0 %v556
        %585 = vmatprep.subr.bf16.mxu0 0
        %586 = vmatpush1.bf16.msra.mxu0 %v555
        %587 = vmatprep.subr.bf16.mxu0 0
        %588 = vmatpush2.bf16.msra.mxu0 0
        %589 = vmatprep.subr.bf16.mxu0 0
        %590 = vmatpush2.bf16.msra.mxu0 0
        %591 = vmatprep.subr.bf16.mxu0 0
        %592 = vmatpush2.bf16.msra.mxu0 0
        %593 = vmatprep.subr.bf16.mxu0 0
        %594 = vmatpush2.bf16.msra.mxu0 0
        %595 = vmatprep.subr.bf16.mxu0 0
        %596 = vmatpush2.bf16.msra.mxu0 0
        %597 = vmatprep.subr.bf16.mxu0 0
        %598 = vmatpush2.bf16.msra.mxu0 0
        %599 = vmatprep.subr.bf16.mxu0 0
        %600 = vmatpush2.bf16.msra.mxu0 0
        %601 = vmatprep.subr.bf16.mxu0 0
        %602 = vmatpush2.bf16.msra.mxu0 0
        %603 = vmatprep.mubr.bf16.mxu0 0
        %604 = vmatmul.mubr.bf16.gmra.mxu0 %v506
        %v605 = vpop.f32.mrf.mxu0
        %v606 = vadd.f32 0.0, %v605
        %v607 = vpop.f32.mrf.mxu0
        %v608 = vpop.f32.mrf.mxu0
        %v609 = vpop.f32.mrf.mxu0
        %610 = vdwg.mxu0
        %v611 = vmul.f32 %v606, %v606
        %v612 = vadd.f32 %v611, 1e-08
        %v613 = vrsqrt.pop %v612
        %v614 = vmul.f32 %v612, %v613
        %vm615 = vcmp.eq.f32.partialorder %v612, inf
        %v616 = vsel %vm615, %v612, %v614
        %vm617 = vcmp.eq.f32.partialorder %v612, 0.0
        %v618 = vand.u32 %v612, 2147483648
        %v619 = vsel %vm617, %v618, %v616
        %v620 = vmul.f32 %v619, %v466
        %v621 = vld [vmem:[#allocation7] sm:$0xf]
        %v622 = vld [vmem:[#allocation7 + $0x4] sm:$0xf]
        %v623 = vld [vmem:[#allocation7 + $0x8] sm:$0xf]
        %v624 = vld [vmem:[#allocation7 + $0xc] sm:$0xf]
        %v625 = vld [vmem:[#allocation7 + $0x10] sm:$0xf]
        %v626 = vld [vmem:[#allocation7 + $0x14] sm:$0xf]
        %v627 = vld [vmem:[#allocation7 + $0x18] sm:$0xf]
        %v628 = vld [vmem:[#allocation7 + $0x1c] sm:$0xf]
        %v629 = vld [vmem:[#allocation7 + $0x20] sm:$0xf]
        %v630 = vld [vmem:[#allocation7 + $0x24] sm:$0xf]
        %v631 = vld [vmem:[#allocation7 + $0x28] sm:$0xf]
        %v632 = vld [vmem:[#allocation7 + $0x2c] sm:$0xf]
        %v633 = vld [vmem:[#allocation7 + $0x30] sm:$0xf]
        %v634 = vld [vmem:[#allocation7 + $0x34] sm:$0xf]
        %v635 = vld [vmem:[#allocation7 + $0x38] sm:$0xf]
        %v636 = vld [vmem:[#allocation7 + $0x3c] sm:$0xf]
        %v653 = vunpack.c.l.b16 %v621
        %v654 = vunpack.c.l.b16 %v622
        %v655 = vunpack.c.l.b16 %v623
        %v656 = vunpack.c.l.b16 %v624
        %v657 = vunpack.c.l.b16 %v625
        %v658 = vunpack.c.l.b16 %v626
        %v659 = vunpack.c.l.b16 %v627
        %v660 = vunpack.c.l.b16 %v628
        %v661 = vunpack.c.l.b16 %v629
        %v662 = vunpack.c.l.b16 %v630
        %v663 = vunpack.c.l.b16 %v631
        %v664 = vunpack.c.l.b16 %v632
        %v665 = vunpack.c.l.b16 %v633
        %v666 = vunpack.c.l.b16 %v634
        %v667 = vunpack.c.l.b16 %v635
        %v668 = vunpack.c.l.b16 %v636
        %v669 = vpack.c.b16 %v654, %v653
        %v670 = vpack.c.b16 %v656, %v655
        %v671 = vpack.c.b16 %v658, %v657
        %v672 = vpack.c.b16 %v660, %v659
        %v673 = vpack.c.b16 %v662, %v661
        %v674 = vpack.c.b16 %v664, %v663
        %v675 = vpack.c.b16 %v666, %v665
        %v676 = vpack.c.b16 %v668, %v667
        %685 = vmatprep.subr.bf16.mxu0 0
        %686 = vmatpush1.bf16.msra.mxu0 %v676
        %687 = vmatprep.subr.bf16.mxu0 0
        %688 = vmatpush1.bf16.msra.mxu0 %v675
        %689 = vmatprep.subr.bf16.mxu0 0
        %690 = vmatpush1.bf16.msra.mxu0 %v674
        %691 = vmatprep.subr.bf16.mxu0 0
        %692 = vmatpush1.bf16.msra.mxu0 %v673
        %693 = vmatprep.subr.bf16.mxu0 0
        %694 = vmatpush1.bf16.msra.mxu0 %v672
        %695 = vmatprep.subr.bf16.mxu0 0
        %696 = vmatpush1.bf16.msra.mxu0 %v671
        %697 = vmatprep.subr.bf16.mxu0 0
        %698 = vmatpush1.bf16.msra.mxu0 %v670
        %699 = vmatprep.subr.bf16.mxu0 0
        %700 = vmatpush1.bf16.msra.mxu0 %v669
        %701 = vmatprep.subr.bf16.mxu0 0
        %702 = vmatpush2.bf16.msra.mxu0 0
        %703 = vmatprep.subr.bf16.mxu0 0
        %704 = vmatpush2.bf16.msra.mxu0 0
        %705 = vmatprep.subr.bf16.mxu0 0
        %706 = vmatpush2.bf16.msra.mxu0 0
        %707 = vmatprep.subr.bf16.mxu0 0
        %708 = vmatpush2.bf16.msra.mxu0 0
        %709 = vmatprep.subr.bf16.mxu0 0
        %710 = vmatpush2.bf16.msra.mxu0 0
        %711 = vmatprep.subr.bf16.mxu0 0
        %712 = vmatpush2.bf16.msra.mxu0 0
        %713 = vmatprep.subr.bf16.mxu0 0
        %714 = vmatpush2.bf16.msra.mxu0 0
        %715 = vmatprep.subr.bf16.mxu0 0
        %716 = vmatpush2.bf16.msra.mxu0 0
        %717 = vmatprep.mubr.bf16.mxu0 0
        %718 = vmatmul.mubr.bf16.gmra.mxu0 %v506
        %v719 = vpop.f32.mrf.mxu0
        %v720 = vadd.f32 0.0, %v719
        %v721 = vpop.f32.mrf.mxu0
        %v722 = vpop.f32.mrf.mxu0
        %v723 = vpop.f32.mrf.mxu0
        %724 = vdwg.mxu0
        %v725 = vpack.c.bf16 %v720, %v720
        %726 = vmatprep.subr.bf16.mxu0 0
        %727 = vmatpush1.bf16.xpose.msra.mxu0 0
        %728 = vmatprep.subr.bf16.mxu0 0
        %729 = vmatpush1.bf16.xpose.msra.mxu0 0
        %730 = vmatprep.subr.bf16.mxu0 0
        %731 = vmatpush1.bf16.xpose.msra.mxu0 0
        %732 = vmatprep.subr.bf16.mxu0 0
        %733 = vmatpush1.bf16.xpose.msra.mxu0 0
        %734 = vmatprep.subr.bf16.mxu0 0
        %735 = vmatpush1.bf16.xpose.msra.mxu0 0
        %736 = vmatprep.subr.bf16.mxu0 0
        %737 = vmatpush1.bf16.xpose.msra.mxu0 0
        %738 = vmatprep.subr.bf16.mxu0 0
        %739 = vmatpush1.bf16.xpose.msra.mxu0 0
        %740 = vmatprep.subr.bf16.mxu0 0
        %741 = vmatpush1.bf16.xpose.msra.mxu0 %v506
        %742 = vmatprep.subr.bf16.mxu0 0
        %743 = vmatpush2.bf16.xpose.msra.mxu0 0
        %744 = vmatprep.subr.bf16.mxu0 0
        %745 = vmatpush2.bf16.xpose.msra.mxu0 0
        %746 = vmatprep.subr.bf16.mxu0 0
        %747 = vmatpush2.bf16.xpose.msra.mxu0 0
        %748 = vmatprep.subr.bf16.mxu0 0
        %749 = vmatpush2.bf16.xpose.msra.mxu0 0
        %750 = vmatprep.subr.bf16.mxu0 0
        %751 = vmatpush2.bf16.xpose.msra.mxu0 0
        %752 = vmatprep.subr.bf16.mxu0 0
        %753 = vmatpush2.bf16.xpose.msra.mxu0 0
        %754 = vmatprep.subr.bf16.mxu0 0
        %755 = vmatpush2.bf16.xpose.msra.mxu0 0
        %756 = vmatprep.subr.bf16.mxu0 0
        %757 = vmatpush2.bf16.xpose.msra.mxu0 0
        %758 = vmatprep.mubr.bf16.mxu0 0
        %759 = vmatmul.mubr.bf16.gmra.mxu0 %v725
        %v760 = vpop.f32.mrf.mxu0
        %v761 = vadd.f32 0.0, %v760
        %v762 = vpop.f32.mrf.mxu0
        %v763 = vpop.f32.mrf.mxu0
        %v764 = vpop.f32.mrf.mxu0
        %765 = vdwg.mxu0
        %v766 = vmul.f32 %v761, %v761
        %v767 = vadd.f32 %v766, 1e-08
        %v768 = vrsqrt.pop %v767
        %v769 = vmul.f32 %v767, %v768
        %vm770 = vcmp.eq.f32.partialorder %v767, inf
        %v771 = vsel %vm770, %v767, %v769
        %vm772 = vcmp.eq.f32.partialorder %v767, 0.0
        %v773 = vand.u32 %v767, 2147483648
        %v774 = vsel %vm772, %v773, %v771
        %vm775 = vcmask 64512
        %v776 = vsel %vm775, %v774, -inf
        %777 = vmax.xlane.f32.xlu0 %v776
        %v778 = vpop.xlane.xlu0 %777
        %v779 = vsub.f32 %v774, %v778
        %v780 = vmul.f32 %v779, 1.442695
        %v781 = vpow.pop %v780
        %v782 = vsel %vm775, %v781, 0.0
        %783 = vadd.xlane.f32.xlu0 %v782
        %v784 = vpop.xlane.xlu0 %783
        %v785 = vrcp.pop %v784
        %v786 = vmul.f32 %v781, %v785
        %v787 = vpack.c.bf16 %v786, %v786
        %v788 = vpack.c.bf16 %v620, %v620
        %v790 = vsel %vm775, %v787, 0
        %vm792 = vcmask 1043456
        %v794 = vsel %vm792, %v788, 0
        %796 = vmatprep.subr.bf16.mxu0 0
        %797 = vmatpush1.bf16.msra.mxu0 0
        %798 = vmatprep.subr.bf16.mxu0 0
        %799 = vmatpush1.bf16.msra.mxu0 0
        %800 = vmatprep.subr.bf16.mxu0 0
        %801 = vmatpush1.bf16.msra.mxu0 0
        %802 = vmatprep.subr.bf16.mxu0 0
        %803 = vmatpush1.bf16.msra.mxu0 0
        %804 = vmatprep.subr.bf16.mxu0 0
        %805 = vmatpush1.bf16.msra.mxu0 0
        %806 = vmatprep.subr.bf16.mxu0 0
        %807 = vmatpush1.bf16.msra.mxu0 0
        %808 = vmatprep.subr.bf16.mxu0 0
        %809 = vmatpush1.bf16.msra.mxu0 0
        %810 = vmatprep.subr.bf16.mxu0 0
        %811 = vmatpush1.bf16.msra.mxu0 %v794
        %812 = vmatprep.subr.bf16.mxu0 0
        %813 = vmatpush2.bf16.msra.mxu0 0
        %814 = vmatprep.subr.bf16.mxu0 0
        %815 = vmatpush2.bf16.msra.mxu0 0
        %816 = vmatprep.subr.bf16.mxu0 0
        %817 = vmatpush2.bf16.msra.mxu0 0
        %818 = vmatprep.subr.bf16.mxu0 0
        %819 = vmatpush2.bf16.msra.mxu0 0
        %820 = vmatprep.subr.bf16.mxu0 0
        %821 = vmatpush2.bf16.msra.mxu0 0
        %822 = vmatprep.subr.bf16.mxu0 0
        %823 = vmatpush2.bf16.msra.mxu0 0
        %824 = vmatprep.subr.bf16.mxu0 0
        %825 = vmatpush2.bf16.msra.mxu0 0
        %826 = vmatprep.subr.bf16.mxu0 0
        %827 = vmatpush2.bf16.msra.mxu0 0
        %828 = vmatprep.mubr.bf16.mxu0 0
        %829 = vmatmul.mubr.bf16.gmra.mxu0 %v790
        %v830 = vpop.f32.mrf.mxu0
        %v831 = vadd.f32 0.0, %v830
        %v832 = vpop.f32.mrf.mxu0
        %v833 = vpop.f32.mrf.mxu0
        %v834 = vpop.f32.mrf.mxu0
        %835 = vdwg.mxu0
        %v836 = vadd.f32 %v461, %v831
        %v837 = vld [vmem:[%s5] sm:$0x1]
        %v838 = vld [vmem:[%s6] sm:$0x1]
        %839 = vadd.xlane.f32.xlu0 %v836
        %v840 = vpop.xlane.xlu0 %839
        %v841 = vmul.f32 %v840, 0.125
        %v842 = vsub.f32 %v836, %v841
        %v843 = vmul.f32 %v842, %v466
        %v844 = vmul.f32 %v843, %v843
        %845 = vadd.xlane.f32.xlu0 %v844
        %v846 = vpop.xlane.xlu0 %845
        %v847 = vmul.f32 %v846, 0.125
        %v848 = vadd.f32 %v847, 1e-05
        %v849 = vrsqrt.pop %v848
        %v850 = vmul.f32 %v843, %v849
        %v852 = vlaneseq
        %v853 = vshrl.u32 %v852, 7
        %v854 = vsub.s32 0, %v853
        %v855 = vrot.slane %v837, %v854
        %v857 = vmul.f32 %v850, %v855
        %v859 = vlaneseq
        %v860 = vshrl.u32 %v859, 7
        %v861 = vsub.s32 0, %v860
        %v862 = vrot.slane %v838, %v861
        %v864 = vadd.f32 %v857, %v862
        %v865 = vpack.c.bf16 %v864, %v864
        %v866 = vld [vmem:[#allocation8] sm:$0xf]
        %v867 = vld [vmem:[#allocation8 + $0x4] sm:$0xf]
        %v868 = vld [vmem:[#allocation8 + $0x8] sm:$0xf]
        %v869 = vld [vmem:[#allocation8 + $0xc] sm:$0xf]
        %v870 = vld [vmem:[#allocation8 + $0x10] sm:$0xf]
        %v871 = vld [vmem:[#allocation8 + $0x14] sm:$0xf]
        %v872 = vld [vmem:[#allocation8 + $0x18] sm:$0xf]
        %v873 = vld [vmem:[#allocation8 + $0x1c] sm:$0xf]
        %v874 = vld [vmem:[#allocation8 + $0x20] sm:$0xf]
        %v875 = vld [vmem:[#allocation8 + $0x24] sm:$0xf]
        %v876 = vld [vmem:[#allocation8 + $0x28] sm:$0xf]
        %v877 = vld [vmem:[#allocation8 + $0x2c] sm:$0xf]
        %v878 = vld [vmem:[#allocation8 + $0x30] sm:$0xf]
        %v879 = vld [vmem:[#allocation8 + $0x34] sm:$0xf]
        %v880 = vld [vmem:[#allocation8 + $0x38] sm:$0xf]
        %v881 = vld [vmem:[#allocation8 + $0x3c] sm:$0xf]
        %v882 = vld [vmem:[%s8] sm:$0x1]
        %v884 = vlaneseq
        %v885 = vshrl.u32 %v884, 7
        %v886 = vsub.s32 0, %v885
        %v887 = vrot.slane %v882, %v886
        %v905 = vunpack.c.l.b16 %v866
        %v906 = vunpack.c.l.b16 %v867
        %v907 = vunpack.c.l.b16 %v868
        %v908 = vunpack.c.l.b16 %v869
        %v909 = vunpack.c.l.b16 %v870
        %v910 = vunpack.c.l.b16 %v871
        %v911 = vunpack.c.l.b16 %v872
        %v912 = vunpack.c.l.b16 %v873
        %v913 = vunpack.c.l.b16 %v874
        %v914 = vunpack.c.l.b16 %v875
        %v915 = vunpack.c.l.b16 %v876
        %v916 = vunpack.c.l.b16 %v877
        %v917 = vunpack.c.l.b16 %v878
        %v918 = vunpack.c.l.b16 %v879
        %v919 = vunpack.c.l.b16 %v880
        %v920 = vunpack.c.l.b16 %v881
        %v921 = vpack.c.b16 %v906, %v905
        %v922 = vpack.c.b16 %v908, %v907
        %v923 = vpack.c.b16 %v910, %v909
        %v924 = vpack.c.b16 %v912, %v911
        %v925 = vpack.c.b16 %v914, %v913
        %v926 = vpack.c.b16 %v916, %v915
        %v927 = vpack.c.b16 %v918, %v917
        %v928 = vpack.c.b16 %v920, %v919
        %937 = vmatprep.subr.bf16.mxu0 0
        %938 = vmatpush1.bf16.msra.mxu0 %v928
        %939 = vmatprep.subr.bf16.mxu0 0
        %940 = vmatpush1.bf16.msra.mxu0 %v927
        %941 = vmatprep.subr.bf16.mxu0 0
        %942 = vmatpush1.bf16.msra.mxu0 %v926
        %943 = vmatprep.subr.bf16.mxu0 0
        %944 = vmatpush1.bf16.msra.mxu0 %v925
        %945 = vmatprep.subr.bf16.mxu0 0
        %946 = vmatpush1.bf16.msra.mxu0 %v924
        %947 = vmatprep.subr.bf16.mxu0 0
        %948 = vmatpush1.bf16.msra.mxu0 %v923
        %949 = vmatprep.subr.bf16.mxu0 0
        %950 = vmatpush1.bf16.msra.mxu0 %v922
        %951 = vmatprep.subr.bf16.mxu0 0
        %952 = vmatpush1.bf16.msra.mxu0 %v921
        %953 = vmatprep.subr.bf16.mxu0 0
        %954 = vmatpush2.bf16.msra.mxu0 0
        %955 = vmatprep.subr.bf16.mxu0 0
        %956 = vmatpush2.bf16.msra.mxu0 0
        %957 = vmatprep.subr.bf16.mxu0 0
        %958 = vmatpush2.bf16.msra.mxu0 0
        %959 = vmatprep.subr.bf16.mxu0 0
        %960 = vmatpush2.bf16.msra.mxu0 0
        %961 = vmatprep.subr.bf16.mxu0 0
        %962 = vmatpush2.bf16.msra.mxu0 0
        %963 = vmatprep.subr.bf16.mxu0 0
        %964 = vmatpush2.bf16.msra.mxu0 0
        %965 = vmatprep.subr.bf16.mxu0 0
        %966 = vmatpush2.bf16.msra.mxu0 0
        %967 = vmatprep.subr.bf16.mxu0 0
        %968 = vmatpush2.bf16.msra.mxu0 0
        %969 = vmatprep.mubr.bf16.mxu0 0
        %970 = vmatmul.mubr.bf16.gmra.mxu0 %v865
        %v971 = vpop.f32.mrf.mxu0
        %v972 = vadd.f32 %v887, %v971
        %v973 = vpop.f32.mrf.mxu0
        %v974 = vpop.f32.mrf.mxu0
        %v975 = vpop.f32.mrf.mxu0
        %976 = vdwg.mxu0
        %v977 = vmul.f32 %v972, 0.5
        %v978 = vmul.f32 %v972, 0.70710677
        %v979 = verf.f32.pop %v978
        %v980 = vadd.f32 %v979, 1.0
        %v981 = vmul.f32 %v977, %v980
        %v982 = vpack.c.bf16 %v981, %v981
        %v983 = vld [vmem:[#allocation10] sm:$0xf]
        %v984 = vld [vmem:[#allocation10 + $0x4] sm:$0xf]
        %v985 = vld [vmem:[#allocation10 + $0x8] sm:$0xf]
        %v986 = vld [vmem:[#allocation10 + $0xc] sm:$0xf]
        %v987 = vld [vmem:[#allocation10 + $0x10] sm:$0xf]
        %v988 = vld [vmem:[#allocation10 + $0x14] sm:$0xf]
        %v989 = vld [vmem:[#allocation10 + $0x18] sm:$0xf]
        %v990 = vld [vmem:[#allocation10 + $0x1c] sm:$0xf]
        %v991 = vld [vmem:[#allocation10 + $0x20] sm:$0xf]
        %v992 = vld [vmem:[#allocation10 + $0x24] sm:$0xf]
        %v993 = vld [vmem:[#allocation10 + $0x28] sm:$0xf]
        %v994 = vld [vmem:[#allocation10 + $0x2c] sm:$0xf]
        %v995 = vld [vmem:[#allocation10 + $0x30] sm:$0xf]
        %v996 = vld [vmem:[#allocation10 + $0x34] sm:$0xf]
        %v997 = vld [vmem:[#allocation10 + $0x38] sm:$0xf]
        %v998 = vld [vmem:[#allocation10 + $0x3c] sm:$0xf]
        %v999 = vld [vmem:[%s10] sm:$0x1]
        %v1001 = vlaneseq
        %v1002 = vshrl.u32 %v1001, 7
        %v1003 = vsub.s32 0, %v1002
        %v1004 = vrot.slane %v999, %v1003
        %v1022 = vunpack.c.l.b16 %v983
        %v1023 = vunpack.c.l.b16 %v984
        %v1024 = vunpack.c.l.b16 %v985
        %v1025 = vunpack.c.l.b16 %v986
        %v1026 = vunpack.c.l.b16 %v987
        %v1027 = vunpack.c.l.b16 %v988
        %v1028 = vunpack.c.l.b16 %v989
        %v1029 = vunpack.c.l.b16 %v990
        %v1030 = vunpack.c.l.b16 %v991
        %v1031 = vunpack.c.l.b16 %v992
        %v1032 = vunpack.c.l.b16 %v993
        %v1033 = vunpack.c.l.b16 %v994
        %v1034 = vunpack.c.l.b16 %v995
        %v1035 = vunpack.c.l.b16 %v996
        %v1036 = vunpack.c.l.b16 %v997
        %v1037 = vunpack.c.l.b16 %v998
        %v1038 = vpack.c.b16 %v1023, %v1022
        %v1039 = vpack.c.b16 %v1025, %v1024
        %v1040 = vpack.c.b16 %v1027, %v1026
        %v1041 = vpack.c.b16 %v1029, %v1028
        %v1042 = vpack.c.b16 %v1031, %v1030
        %v1043 = vpack.c.b16 %v1033, %v1032
        %v1044 = vpack.c.b16 %v1035, %v1034
        %v1045 = vpack.c.b16 %v1037, %v1036
        %1054 = vmatprep.subr.bf16.mxu0 0
        %1055 = vmatpush1.bf16.msra.mxu0 %v1045
        %1056 = vmatprep.subr.bf16.mxu0 0
        %1057 = vmatpush1.bf16.msra.mxu0 %v1044
        %1058 = vmatprep.subr.bf16.mxu0 0
        %1059 = vmatpush1.bf16.msra.mxu0 %v1043
        %1060 = vmatprep.subr.bf16.mxu0 0
        %1061 = vmatpush1.bf16.msra.mxu0 %v1042
        %1062 = vmatprep.subr.bf16.mxu0 0
        %1063 = vmatpush1.bf16.msra.mxu0 %v1041
        %1064 = vmatprep.subr.bf16.mxu0 0
        %1065 = vmatpush1.bf16.msra.mxu0 %v1040
        %1066 = vmatprep.subr.bf16.mxu0 0
        %1067 = vmatpush1.bf16.msra.mxu0 %v1039
        %1068 = vmatprep.subr.bf16.mxu0 0
        %1069 = vmatpush1.bf16.msra.mxu0 %v1038
        %1070 = vmatprep.subr.bf16.mxu0 0
        %1071 = vmatpush2.bf16.msra.mxu0 0
        %1072 = vmatprep.subr.bf16.mxu0 0
        %1073 = vmatpush2.bf16.msra.mxu0 0
        %1074 = vmatprep.subr.bf16.mxu0 0
        %1075 = vmatpush2.bf16.msra.mxu0 0
        %1076 = vmatprep.subr.bf16.mxu0 0
        %1077 = vmatpush2.bf16.msra.mxu0 0
        %1078 = vmatprep.subr.bf16.mxu0 0
        %1079 = vmatpush2.bf16.msra.mxu0 0
        %1080 = vmatprep.subr.bf16.mxu0 0
        %1081 = vmatpush2.bf16.msra.mxu0 0
        %1082 = vmatprep.subr.bf16.mxu0 0
        %1083 = vmatpush2.bf16.msra.mxu0 0
        %1084 = vmatprep.subr.bf16.mxu0 0
        %1085 = vmatpush2.bf16.msra.mxu0 0
        %1086 = vmatprep.mubr.bf16.mxu0 0
        %1087 = vmatmul.mubr.bf16.gmra.mxu0 %v982
        %v1088 = vpop.f32.mrf.mxu0
        %v1089 = vadd.f32 %v1004, %v1088
        %v1090 = vpop.f32.mrf.mxu0
        %v1091 = vpop.f32.mrf.mxu0
        %v1092 = vpop.f32.mrf.mxu0
        %1093 = vdwg.mxu0
        %v1094 = vadd.f32 %v836, %v1089
        %1095 = vst [vmem:[%s459] sm:$0xff] %v1094
        %s1096 = sand.u32 %s274, 1
        %s1097 = scalar_lea.sflag [#allocation4], %s1096
        %s1098 = sand.u32 %s274, 1
        %s1099 = smul.addr %s1098, 8
        %s1100 = scalar_lea.vmem [#allocation11], %s1099
        // Predicated region
        $region85: #{tpu_custom_call.1} parent=63 // pred_check
          %p1101 = pneg %p284
        $region86: #{tpu_custom_call.1} parent=63 // pred_check_branch
          %1103 = sbr.rel (%p1101) target = $region88
        $region87: #{tpu_custom_call.1} parent=63 // pred_region
          %s1105 = ssub.s32 128, 128
          %1106 = vsyncadd %s1097, %s1105
          %s1107 = smul.addr %s30, 128
          %s1108 = scalar_lea.hbm %s11, %s1107
          %s1110 = sshll.u32 %s1100, 4
          %s1111 = int_to_ptr.vmem [resolvable:$true] %s1110
          %1113 = dma.vmem_to_hbm [thread:$0]  %s1111, 128, %s1108, %s1097
        $region88: #{tpu_custom_call.1} parent=63 // pred_fallthru
          _
      $region64: #{tpu_custom_call.1} parent=5 // pred_fallthru
        _
      %p1114 = scmp.le.s32.totalorder 2, %s25
      // Predicated region
      $region89: #{tpu_custom_call.1} parent=5 // pred_check
        %p1115 = pneg %p1114
      $region90: #{tpu_custom_call.1} parent=5 // pred_check_branch
        %1117 = sbr.rel (%p1115) target = $region92
      $region91: #{tpu_custom_call.1} parent=5 // pred_region
        %s1118 = ssub.s32 %s25, 2
        // Predicated region
        $region93: #{tpu_custom_call.1} parent=91 // pred_check
          %p1119 = pneg %p290
        $region94: #{tpu_custom_call.1} parent=91 // pred_check_branch
          %1121 = sbr.rel (%p1119) target = $region96
        $region95: #{tpu_custom_call.1} parent=91 // pred_region
          %s1122 = sand.u32 %s275, 1
          %s1123 = scalar_lea.sflag [#allocation4], %s1122
          %s1124 = sand.u32 %s275, 1
          %s1125 = smul.addr %s1124, 8
          %s1126 = scalar_lea.vmem [#allocation11], %s1125
          %1127 = dma.done %s1123, 128
        $region96: #{tpu_custom_call.1} parent=91 // pred_fallthru
          _
      $region92: #{tpu_custom_call.1} parent=5 // pred_fallthru
        _
    $region6: #{tpu_custom_call.1} parent=1 // loop_footer
      %s29 = sadd.s32 1, %s25
    $region7: #{tpu_custom_call.1} parent=1 // loop_footer_branch
      %24 = sbr.rel target = $region3
    $region8: #{tpu_custom_call.1} parent=1 // loop_exit
      _
    %1128 = vsyncpa [#allocation3], 1
    %s1129 = scalar_lea.sflag [#allocation3], 1
    %1130 = vsyncpa %s1129, 1
    %1131 = vsyncpa [#allocation6], 1
    %1132 = vsyncpa [#allocation9], 1
    %1133 = vsyncpa [#allocation4], 1
    %s1134 = scalar_lea.sflag [#allocation4], 1
    %1135 = vsyncpa %s1134, 1

// kernel: tpu_custom_call.1
$region0: #{tpu_custom_call.1}
  #allocation0 [shape = 'u32[]', space=smem, size = 0x4, offset = 0x4, fixed_abs, tag = 'smem constant byte address 0x4 - core index']
  #allocation1 [shape = 'u32[144,128]{1,0:T(1,128)}', space=vmem, size = 0x12000, scoped, tag = 'internal scratch']
  %s0 = inlined_call_operand.hbm [shape: f32[2,8,128], index: 0, kind: input, shape index: {}]
  %s1 = inlined_call_operand.vmem [shape: f32[1,128], index: 1, kind: input, shape index: {}]
  %s2 = inlined_call_operand.vmem [shape: f32[1,128], index: 2, kind: input, shape index: {}]
  %s3 = inlined_call_operand.hbm [shape: bf16[128,128], index: 3, kind: input, shape index: {}]
  %s4 = inlined_call_operand.hbm [shape: bf16[128,128], index: 4, kind: input, shape index: {}]
  %s5 = inlined_call_operand.vmem [shape: f32[1,128], index: 5, kind: input, shape index: {}]
  %s6 = inlined_call_operand.vmem [shape: f32[1,128], index: 6, kind: input, shape index: {}]
  %s7 = inlined_call_operand.hbm [shape: bf16[128,128], index: 7, kind: input, shape index: {}]
  %s8 = inlined_call_operand.vmem [shape: f32[1,128], index: 8, kind: input, shape index: {}]
  %s9 = inlined_call_operand.hbm [shape: bf16[128,128], index: 9, kind: input, shape index: {}]
  %s10 = inlined_call_operand.vmem [shape: f32[1,128], index: 10, kind: input, shape index: {}]
  %s11 = inlined_call_operand.hbm [shape: f32[2,8,128], index: 11, kind: output, shape index: {}]
  %s12 = sld [smem:[#allocation0]]
  $region97: #{tpu_custom_call.1} parent=0
    _
  %s14 = ssub.s32 1, %s12
  %s15 = scalar_select 0, %s14, %s12
  $region1: #{tpu_custom_call.1} parent=0
    #allocation2 [shape = 'u8[8192]{0}', space=vmem, size = 0x2000, scoped, tag = 'input window, operand 0']
    #allocation3 [shape = 's32[2]{0}', space=sflag, size = 0x8, scoped, tag = 'scoped memory for tpu_custom_call.1']
    #allocation4 [shape = 's32[2]{0}', space=sflag, size = 0x8, scoped, tag = 'scoped memory for tpu_custom_call.1']
    #allocation5 [shape = 'u8[32768]{0}', space=vmem, size = 0x8000, scoped, tag = 'input window, operand 3, single buffered']
    #allocation6 [shape = 's32[1]{0}', space=sflag, size = 0x4, scoped, tag = 'scoped memory for tpu_custom_call.1']
    #allocation7 [shape = 'u8[32768]{0}', space=vmem, size = 0x8000, scoped, tag = 'input window, operand 4, single buffered']
    #allocation8 [shape = 'u8[32768]{0}', space=vmem, size = 0x8000, scoped, tag = 'input window, operand 7, single buffered']
    #allocation9 [shape = 's32[1]{0}', space=sflag, size = 0x4, scoped, tag = 'scoped memory for tpu_custom_call.1']
    #allocation10 [shape = 'u8[32768]{0}', space=vmem, size = 0x8000, scoped, tag = 'input window, operand 9, single buffered']
    #allocation11 [shape = 'u8[8192]{0}', space=vmem, size = 0x2000, scoped, tag = 'output window, operand 0']
    %16 = vsyncpa [#allocation3], 0
    %s17 = scalar_lea.sflag [#allocation3], 1
    %18 = vsyncpa %s17, 0
    %19 = vsyncpa [#allocation6], 0
    %20 = vsyncpa [#allocation9], 0
    %21 = vsyncpa [#allocation4], 0
    %s22 = scalar_lea.sflag [#allocation4], 1
    %23 = vsyncpa %s22, 0
    loop: start=0, step=1, limit=4
    $region2: #{tpu_custom_call.1} parent=1 // loop_pre_header
      _
    $region3: #{tpu_custom_call.1} parent=1 // loop_header
      %s25 = sphi 0, %s29
      %p26 = scmp.ge.s32.totalorder %s25, 4
      %s35 = sphi 0, %s37
      %s38 = sphi 0, %s35
      %s39 = sphi 0, %s38
      %s55 = sphi 0, %s39
      %s59 = sphi 0, %s59
      %s61 = sphi 0, %s59
      %s62 = sphi 0, %s61
      %s76 = sphi 0, %s62
      %s80 = sphi 0, %s80
      %s82 = sphi 0, %s80
      %s83 = sphi 0, %s82
      %s97 = sphi 0, %s83
      %s101 = sphi 0, %s101
      %s103 = sphi 0, %s101
      %s104 = sphi 0, %s103
      %s118 = sphi 0, %s104
      %s122 = sphi 0, %s122
      %s124 = sphi 0, %s122
      %s125 = sphi 0, %s124
      %s139 = sphi 0, %s125
      %s143 = sphi 0, %s143
      %s145 = sphi 0, %s143
      %s146 = sphi 0, %s145
      %s160 = sphi 0, %s146
      %s164 = sphi 0, %s164
      %s166 = sphi 0, %s164
      %s167 = sphi 0, %s166
      %s181 = sphi 0, %s167
      %s185 = sphi 0, %s185
      %s187 = sphi 0, %s185
      %s188 = sphi 0, %s187
      %s202 = sphi 0, %s188
      %s206 = sphi 0, %s206
      %s208 = sphi 0, %s206
      %s209 = sphi 0, %s208
      %s223 = sphi 0, %s209
      %s227 = sphi 0, %s227
      %s229 = sphi 0, %s227
      %s230 = sphi 0, %s229
      %s244 = sphi 0, %s230
      %s248 = sphi 0, %s248
      %s250 = sphi 0, %s248
      %s251 = sphi 0, %s250
      %s265 = sphi 0, %s251
      %s271 = sphi 0, %s273
      %s274 = sphi 0, %s271
      %s275 = sphi 0, %s274
      %s291 = sphi 0, %s275
    $region4: #{tpu_custom_call.1} parent=1 // loop_header_branch
      %28 = sbr.rel (%p26) target = $region8
    $region5: #{tpu_custom_call.1} parent=1 // loop_body
      %s30 = ssub.s32 %s25, 1
      %s31 = ssub.s32 %s25, 2
      %s32 = sadd.s32 %s25, 1
      %s33 = ssub.s32 %s25, %s32
      %p34 = scmp.eq.s32.totalorder %s33, 0
      %s36 = sadd.s32 %s35, 1
      %s37 = scalar_select %p34, %s35, %s36
      %p40 = pneg %p34
      %p41 = scmp.eq.s32.totalorder %s25, 1
      %p42 = por %p40, %p41
      %p43 = scmp.ne.s32.totalorder %s35, %s38
      %p44 = scmp.eq.s32.totalorder %s25, 0
      %p45 = por %p43, %p44
      %p46 = scmp.ne.s32.totalorder %s35, %s38
      %p47 = scmp.eq.s32.totalorder %s30, 1
      %p48 = por %p46, %p47
      %p49 = scmp.ne.s32.totalorder %s38, %s39
      %p50 = scmp.eq.s32.totalorder %s30, 0
      %p51 = por %p49, %p50
      %p52 = scmp.ne.s32.totalorder %s38, %s39
      %p53 = scmp.eq.s32.totalorder %s31, 1
      %p54 = por %p52, %p53
      %p56 = scmp.ne.s32.totalorder %s39, %s55
      %p57 = scmp.eq.s32.totalorder %s31, 0
      %p58 = por %p56, %p57
      %s60 = sadd.s32 %s59, 1
      %p63 = scmp.eq.s32.totalorder %s25, 1
      %p64 = scmp.ne.s32.totalorder %s59, %s61
      %p65 = scmp.eq.s32.totalorder %s25, 0
      %p66 = por %p64, %p65
      %p67 = scmp.ne.s32.totalorder %s59, %s61
      %p68 = scmp.eq.s32.totalorder %s30, 1
      %p69 = por %p67, %p68
      %p70 = scmp.ne.s32.totalorder %s61, %s62
      %p71 = scmp.eq.s32.totalorder %s30, 0
      %p72 = por %p70, %p71
      %p73 = scmp.ne.s32.totalorder %s61, %s62
      %p74 = scmp.eq.s32.totalorder %s31, 1
      %p75 = por %p73, %p74
      %p77 = scmp.ne.s32.totalorder %s62, %s76
      %p78 = scmp.eq.s32.totalorder %s31, 0
      %p79 = por %p77, %p78
      %s81 = sadd.s32 %s80, 1
      %p84 = scmp.eq.s32.totalorder %s25, 1
      %p85 = scmp.ne.s32.totalorder %s80, %s82
      %p86 = scmp.eq.s32.totalorder %s25, 0
      %p87 = por %p85, %p86
      %p88 = scmp.ne.s32.totalorder %s80, %s82
      %p89 = scmp.eq.s32.totalorder %s30, 1
      %p90 = por %p88, %p89
      %p91 = scmp.ne.s32.totalorder %s82, %s83
      %p92 = scmp.eq.s32.totalorder %s30, 0
      %p93 = por %p91, %p92
      %p94 = scmp.ne.s32.totalorder %s82, %s83
      %p95 = scmp.eq.s32.totalorder %s31, 1
      %p96 = por %p94, %p95
      %p98 = scmp.ne.s32.totalorder %s83, %s97
      %p99 = scmp.eq.s32.totalorder %s31, 0
      %p100 = por %p98, %p99
      %s102 = sadd.s32 %s101, 1
      %p105 = scmp.eq.s32.totalorder %s25, 1
      %p106 = scmp.ne.s32.totalorder %s101, %s103
      %p107 = scmp.eq.s32.totalorder %s25, 0
      %p108 = por %p106, %p107
      %p109 = scmp.ne.s32.totalorder %s101, %s103
      %p110 = scmp.eq.s32.totalorder %s30, 1
      %p111 = por %p109, %p110
      %p112 = scmp.ne.s32.totalorder %s103, %s104
      %p113 = scmp.eq.s32.totalorder %s30, 0
      %p114 = por %p112, %p113
      %p115 = scmp.ne.s32.totalorder %s103, %s104
      %p116 = scmp.eq.s32.totalorder %s31, 1
      %p117 = por %p115, %p116
      %p119 = scmp.ne.s32.totalorder %s104, %s118
      %p120 = scmp.eq.s32.totalorder %s31, 0
      %p121 = por %p119, %p120
      %s123 = sadd.s32 %s122, 1
      %p126 = scmp.eq.s32.totalorder %s25, 1
      %p127 = scmp.ne.s32.totalorder %s122, %s124
      %p128 = scmp.eq.s32.totalorder %s25, 0
      %p129 = por %p127, %p128
      %p130 = scmp.ne.s32.totalorder %s122, %s124
      %p131 = scmp.eq.s32.totalorder %s30, 1
      %p132 = por %p130, %p131
      %p133 = scmp.ne.s32.totalorder %s124, %s125
      %p134 = scmp.eq.s32.totalorder %s30, 0
      %p135 = por %p133, %p134
      %p136 = scmp.ne.s32.totalorder %s124, %s125
      %p137 = scmp.eq.s32.totalorder %s31, 1
      %p138 = por %p136, %p137
      %p140 = scmp.ne.s32.totalorder %s125, %s139
      %p141 = scmp.eq.s32.totalorder %s31, 0
      %p142 = por %p140, %p141
      %s144 = sadd.s32 %s143, 1
      %p147 = scmp.eq.s32.totalorder %s25, 1
      %p148 = scmp.ne.s32.totalorder %s143, %s145
      %p149 = scmp.eq.s32.totalorder %s25, 0
      %p150 = por %p148, %p149
      %p151 = scmp.ne.s32.totalorder %s143, %s145
      %p152 = scmp.eq.s32.totalorder %s30, 1
      %p153 = por %p151, %p152
      %p154 = scmp.ne.s32.totalorder %s145, %s146
      %p155 = scmp.eq.s32.totalorder %s30, 0
      %p156 = por %p154, %p155
      %p157 = scmp.ne.s32.totalorder %s145, %s146
      %p158 = scmp.eq.s32.totalorder %s31, 1
      %p159 = por %p157, %p158
      %p161 = scmp.ne.s32.totalorder %s146, %s160
      %p162 = scmp.eq.s32.totalorder %s31, 0
      %p163 = por %p161, %p162
      %s165 = sadd.s32 %s164, 1
      %p168 = scmp.eq.s32.totalorder %s25, 1
      %p169 = scmp.ne.s32.totalorder %s164, %s166
      %p170 = scmp.eq.s32.totalorder %s25, 0
      %p171 = por %p169, %p170
      %p172 = scmp.ne.s32.totalorder %s164, %s166
      %p173 = scmp.eq.s32.totalorder %s30, 1
      %p174 = por %p172, %p173
      %p175 = scmp.ne.s32.totalorder %s166, %s167
      %p176 = scmp.eq.s32.totalorder %s30, 0
      %p177 = por %p175, %p176
      %p178 = scmp.ne.s32.totalorder %s166, %s167
      %p179 = scmp.eq.s32.totalorder %s31, 1
      %p180 = por %p178, %p179
      %p182 = scmp.ne.s32.totalorder %s167, %s181
      %p183 = scmp.eq.s32.totalorder %s31, 0
      %p184 = por %p182, %p183
      %s186 = sadd.s32 %s185, 1
      %p189 = scmp.eq.s32.totalorder %s25, 1
      %p190 = scmp.ne.s32.totalorder %s185, %s187
      %p191 = scmp.eq.s32.totalorder %s25, 0
      %p192 = por %p190, %p191
      %p193 = scmp.ne.s32.totalorder %s185, %s187
      %p194 = scmp.eq.s32.totalorder %s30, 1
      %p195 = por %p193, %p194
      %p196 = scmp.ne.s32.totalorder %s187, %s188
      %p197 = scmp.eq.s32.totalorder %s30, 0
      %p198 = por %p196, %p197
      %p199 = scmp.ne.s32.totalorder %s187, %s188
      %p200 = scmp.eq.s32.totalorder %s31, 1
      %p201 = por %p199, %p200
      %p203 = scmp.ne.s32.totalorder %s188, %s202
      %p204 = scmp.eq.s32.totalorder %s31, 0
      %p205 = por %p203, %p204
      %s207 = sadd.s32 %s206, 1
      %p210 = scmp.eq.s32.totalorder %s25, 1
      %p211 = scmp.ne.s32.totalorder %s206, %s208
      %p212 = scmp.eq.s32.totalorder %s25, 0
      %p213 = por %p211, %p212
      %p214 = scmp.ne.s32.totalorder %s206, %s208
      %p215 = scmp.eq.s32.totalorder %s30, 1
      %p216 = por %p214, %p215
      %p217 = scmp.ne.s32.totalorder %s208, %s209
      %p218 = scmp.eq.s32.totalorder %s30, 0
      %p219 = por %p217, %p218
      %p220 = scmp.ne.s32.totalorder %s208, %s209
      %p221 = scmp.eq.s32.totalorder %s31, 1
      %p222 = por %p220, %p221
      %p224 = scmp.ne.s32.totalorder %s209, %s223
      %p225 = scmp.eq.s32.totalorder %s31, 0
      %p226 = por %p224, %p225
      %s228 = sadd.s32 %s227, 1
      %p231 = scmp.eq.s32.totalorder %s25, 1
      %p232 = scmp.ne.s32.totalorder %s227, %s229
      %p233 = scmp.eq.s32.totalorder %s25, 0
      %p234 = por %p232, %p233
      %p235 = scmp.ne.s32.totalorder %s227, %s229
      %p236 = scmp.eq.s32.totalorder %s30, 1
      %p237 = por %p235, %p236
      %p238 = scmp.ne.s32.totalorder %s229, %s230
      %p239 = scmp.eq.s32.totalorder %s30, 0
      %p240 = por %p238, %p239
      %p241 = scmp.ne.s32.totalorder %s229, %s230
      %p242 = scmp.eq.s32.totalorder %s31, 1
      %p243 = por %p241, %p242
      %p245 = scmp.ne.s32.totalorder %s230, %s244
      %p246 = scmp.eq.s32.totalorder %s31, 0
      %p247 = por %p245, %p246
      %s249 = sadd.s32 %s248, 1
      %p252 = scmp.eq.s32.totalorder %s25, 1
      %p253 = scmp.ne.s32.totalorder %s248, %s250
      %p254 = scmp.eq.s32.totalorder %s25, 0
      %p255 = por %p253, %p254
      %p256 = scmp.ne.s32.totalorder %s248, %s250
      %p257 = scmp.eq.s32.totalorder %s30, 1
      %p258 = por %p256, %p257
      %p259 = scmp.ne.s32.totalorder %s250, %s251
      %p260 = scmp.eq.s32.totalorder %s30, 0
      %p261 = por %p259, %p260
      %p262 = scmp.ne.s32.totalorder %s250, %s251
      %p263 = scmp.eq.s32.totalorder %s31, 1
      %p264 = por %p262, %p263
      %p266 = scmp.ne.s32.totalorder %s251, %s265
      %p267 = scmp.eq.s32.totalorder %s31, 0
      %p268 = por %p266, %p267
      %s269 = ssub.s32 %s25, %s32
      %p270 = scmp.eq.s32.totalorder %s269, 0
      %s272 = sadd.s32 %s271, 1
      %s273 = scalar_select %p270, %s271, %s272
      %p276 = pneg %p270
      %p277 = scmp.eq.s32.totalorder %s25, 1
      %p278 = por %p276, %p277
      %p279 = scmp.ne.s32.totalorder %s271, %s274
      %p280 = scmp.eq.s32.totalorder %s25, 0
      %p281 = por %p279, %p280
      %p282 = scmp.ne.s32.totalorder %s271, %s274
      %p283 = scmp.eq.s32.totalorder %s30, 1
      %p284 = por %p282, %p283
      %p285 = scmp.ne.s32.totalorder %s274, %s275
      %p286 = scmp.eq.s32.totalorder %s30, 0
      %p287 = por %p285, %p286
      %p288 = scmp.ne.s32.totalorder %s274, %s275
      %p289 = scmp.eq.s32.totalorder %s31, 1
      %p290 = por %p288, %p289
      %p292 = scmp.ne.s32.totalorder %s275, %s291
      %p293 = scmp.eq.s32.totalorder %s31, 0
      %p294 = por %p292, %p293
      %p295 = scmp.le.s32.totalorder 1, %s25
      %p296 = scmp.lt.s32.totalorder %s25, 3
      %p297 = pnand %p295, %p296
      %p298 = pneg %p297
      // Predicated region
      $region9: #{tpu_custom_call.1} parent=5 // pred_check
        _
      $region10: #{tpu_custom_call.1} parent=5 // pred_check_branch
        %300 = sbr.rel (%p297) target = $region12
      $region11: #{tpu_custom_call.1} parent=5 // pred_region
        %s301 = ssub.s32 %s25, 1
        // Predicated region
        $region13: #{tpu_custom_call.1} parent=11 // pred_check
          %p302 = pneg %p72
        $region14: #{tpu_custom_call.1} parent=11 // pred_check_branch
          %304 = sbr.rel (%p302) target = $region16
        $region15: #{tpu_custom_call.1} parent=11 // pred_region
          _
        $region16: #{tpu_custom_call.1} parent=11 // pred_fallthru
          _
        // Predicated region
        $region17: #{tpu_custom_call.1} parent=11 // pred_check
          %p305 = pneg %p93
        $region18: #{tpu_custom_call.1} parent=11 // pred_check_branch
          %307 = sbr.rel (%p305) target = $region20
        $region19: #{tpu_custom_call.1} parent=11 // pred_region
          _
        $region20: #{tpu_custom_call.1} parent=11 // pred_fallthru
          _
        // Predicated region
        $region21: #{tpu_custom_call.1} parent=11 // pred_check
          %p308 = pneg %p114
        $region22: #{tpu_custom_call.1} parent=11 // pred_check_branch
          %310 = sbr.rel (%p308) target = $region24
        $region23: #{tpu_custom_call.1} parent=11 // pred_region
          %s312 = ssub.s32 1024, 1024
          %313 = vsyncadd [#allocation6], %s312
          %s314 = sshll.u32 [#allocation5], 4
          %s315 = int_to_ptr.vmem [resolvable:$true] %s314
          %320 = dma.hbm_to_vmem [thread:$0]  %s3, 1024, %s315, [#allocation6], 64, 64, 4
        $region24: #{tpu_custom_call.1} parent=11 // pred_fallthru
          _
        // Predicated region
        $region25: #{tpu_custom_call.1} parent=11 // pred_check
          %p321 = pneg %p135
        $region26: #{tpu_custom_call.1} parent=11 // pred_check_branch
          %323 = sbr.rel (%p321) target = $region28
        $region27: #{tpu_custom_call.1} parent=11 // pred_region
          %s325 = ssub.s32 1024, 1024
          %326 = vsyncadd [#allocation6], %s325
          %s327 = sshll.u32 [#allocation7], 4
          %s328 = int_to_ptr.vmem [resolvable:$true] %s327
          %333 = dma.hbm_to_vmem [thread:$0]  %s4, 1024, %s328, [#allocation6], 64, 64, 4
        $region28: #{tpu_custom_call.1} parent=11 // pred_fallthru
          _
        // Predicated region
        $region29: #{tpu_custom_call.1} parent=11 // pred_check
          %p334 = pneg %p156
        $region30: #{tpu_custom_call.1} parent=11 // pred_check_branch
          %336 = sbr.rel (%p334) target = $region32
        $region31: #{tpu_custom_call.1} parent=11 // pred_region
          _
        $region32: #{tpu_custom_call.1} parent=11 // pred_fallthru
          _
        // Predicated region
        $region33: #{tpu_custom_call.1} parent=11 // pred_check
          %p337 = pneg %p177
        $region34: #{tpu_custom_call.1} parent=11 // pred_check_branch
          %339 = sbr.rel (%p337) target = $region36
        $region35: #{tpu_custom_call.1} parent=11 // pred_region
          _
        $region36: #{tpu_custom_call.1} parent=11 // pred_fallthru
          _
        // Predicated region
        $region37: #{tpu_custom_call.1} parent=11 // pred_check
          %p340 = pneg %p198
        $region38: #{tpu_custom_call.1} parent=11 // pred_check_branch
          %342 = sbr.rel (%p340) target = $region40
        $region39: #{tpu_custom_call.1} parent=11 // pred_region
          %s344 = ssub.s32 1024, 1024
          %345 = vsyncadd [#allocation9], %s344
          %s346 = sshll.u32 [#allocation8], 4
          %s347 = int_to_ptr.vmem [resolvable:$true] %s346
          %352 = dma.hbm_to_vmem [thread:$0]  %s7, 1024, %s347, [#allocation9], 64, 64, 4
        $region40: #{tpu_custom_call.1} parent=11 // pred_fallthru
          _
        // Predicated region
        $region41: #{tpu_custom_call.1} parent=11 // pred_check
          %p353 = pneg %p219
        $region42: #{tpu_custom_call.1} parent=11 // pred_check_branch
          %355 = sbr.rel (%p353) target = $region44
        $region43: #{tpu_custom_call.1} parent=11 // pred_region
          _
        $region44: #{tpu_custom_call.1} parent=11 // pred_fallthru
          _
        // Predicated region
        $region45: #{tpu_custom_call.1} parent=11 // pred_check
          %p356 = pneg %p240
        $region46: #{tpu_custom_call.1} parent=11 // pred_check_branch
          %358 = sbr.rel (%p356) target = $region48
        $region47: #{tpu_custom_call.1} parent=11 // pred_region
          %s360 = ssub.s32 1024, 1024
          %361 = vsyncadd [#allocation9], %s360
          %s362 = sshll.u32 [#allocation10], 4
          %s363 = int_to_ptr.vmem [resolvable:$true] %s362
          %368 = dma.hbm_to_vmem [thread:$0]  %s9, 1024, %s363, [#allocation9], 64, 64, 4
        $region48: #{tpu_custom_call.1} parent=11 // pred_fallthru
          _
        // Predicated region
        $region49: #{tpu_custom_call.1} parent=11 // pred_check
          %p369 = pneg %p261
        $region50: #{tpu_custom_call.1} parent=11 // pred_check_branch
          %371 = sbr.rel (%p369) target = $region52
        $region51: #{tpu_custom_call.1} parent=11 // pred_region
          _
        $region52: #{tpu_custom_call.1} parent=11 // pred_fallthru
          _
      $region12: #{tpu_custom_call.1} parent=5 // pred_fallthru
        _
      %p372 = scmp.lt.s32.totalorder %s25, 2
      // Predicated region
      $region53: #{tpu_custom_call.1} parent=5 // pred_check
        %p373 = pneg %p372
      $region54: #{tpu_custom_call.1} parent=5 // pred_check_branch
        %375 = sbr.rel (%p373) target = $region56
      $region55: #{tpu_custom_call.1} parent=5 // pred_region
        // Predicated region
        $region57: #{tpu_custom_call.1} parent=55 // pred_check
          %p376 = pneg %p45
        $region58: #{tpu_custom_call.1} parent=55 // pred_check_branch
          %378 = sbr.rel (%p376) target = $region60
        $region59: #{tpu_custom_call.1} parent=55 // pred_region
          %s379 = sand.u32 %s35, 1
          %s380 = scalar_lea.sflag [#allocation3], %s379
          %s381 = sand.u32 %s35, 1
          %s382 = smul.addr %s381, 8
          %s383 = scalar_lea.vmem [#allocation2], %s382
          %s385 = ssub.s32 128, 128
          %386 = vsyncadd %s380, %s385
          %s387 = smul.addr %s25, 128
          %s388 = scalar_lea.hbm %s0, %s387
          %s390 = sshll.u32 %s383, 4
          %s391 = int_to_ptr.vmem [resolvable:$true] %s390
          %393 = dma.hbm_to_vmem [thread:$0]  %s388, 128, %s391, %s380
        $region60: #{tpu_custom_call.1} parent=55 // pred_fallthru
          _
      $region56: #{tpu_custom_call.1} parent=5 // pred_fallthru
        _
      %p394 = scmp.le.s32.totalorder 1, %s25
      %p395 = scmp.lt.s32.totalorder %s25, 3
      %p396 = pnand %p394, %p395
      %p397 = pneg %p396
      // Predicated region
      $region61: #{tpu_custom_call.1} parent=5 // pred_check
        _
      $region62: #{tpu_custom_call.1} parent=5 // pred_check_branch
        %399 = sbr.rel (%p396) target = $region64
      $region63: #{tpu_custom_call.1} parent=5 // pred_region
        %s400 = ssub.s32 %s25, 1
        %s401 = sand.u32 %s38, 1
        %s402 = scalar_lea.sflag [#allocation3], %s401
        %s403 = sand.u32 %s38, 1
        %s404 = smul.addr %s403, 8
        %s405 = scalar_lea.vmem [#allocation2], %s404
        // Predicated region
        $region65: #{tpu_custom_call.1} parent=63 // pred_check
          %p406 = pneg %p51
        $region66: #{tpu_custom_call.1} parent=63 // pred_check_branch
          %408 = sbr.rel (%p406) target = $region68
        $region67: #{tpu_custom_call.1} parent=63 // pred_region
          %409 = dma.done %s402, 128
        $region68: #{tpu_custom_call.1} parent=63 // pred_fallthru
          _
        // Predicated region
        $region69: #{tpu_custom_call.1} parent=63 // pred_check
          %p410 = pneg %p114
        $region70: #{tpu_custom_call.1} parent=63 // pred_check_branch
          %412 = sbr.rel (%p410) target = $region72
        $region71: #{tpu_custom_call.1} parent=63 // pred_region
          %413 = dma.done [#allocation6], 1024
        $region72: #{tpu_custom_call.1} parent=63 // pred_fallthru
          _
        // Predicated region
        $region73: #{tpu_custom_call.1} parent=63 // pred_check
          %p414 = pneg %p135
        $region74: #{tpu_custom_call.1} parent=63 // pred_check_branch
          %416 = sbr.rel (%p414) target = $region76
        $region75: #{tpu_custom_call.1} parent=63 // pred_region
          %417 = dma.done [#allocation6], 1024
        $region76: #{tpu_custom_call.1} parent=63 // pred_fallthru
          _
        // Predicated region
        $region77: #{tpu_custom_call.1} parent=63 // pred_check
          %p418 = pneg %p198
        $region78: #{tpu_custom_call.1} parent=63 // pred_check_branch
          %420 = sbr.rel (%p418) target = $region80
        $region79: #{tpu_custom_call.1} parent=63 // pred_region
          %421 = dma.done [#allocation9], 1024
        $region80: #{tpu_custom_call.1} parent=63 // pred_fallthru
          _
        // Predicated region
        $region81: #{tpu_custom_call.1} parent=63 // pred_check
          %p422 = pneg %p240
        $region82: #{tpu_custom_call.1} parent=63 // pred_check_branch
          %424 = sbr.rel (%p422) target = $region84
        $region83: #{tpu_custom_call.1} parent=63 // pred_region
          %425 = dma.done [#allocation9], 1024
        $region84: #{tpu_custom_call.1} parent=63 // pred_fallthru
          _
        %s426 = sand.u32 %s38, 1
        %s427 = scalar_lea.sflag [#allocation3], %s426
        %s428 = sand.u32 %s38, 1
        %s429 = smul.addr %s428, 8
        %s430 = scalar_lea.vmem [#allocation2], %s429
        %p431 = pneg %p51
        %p432 = pneg %p48
        %p433 = pneg %p72
        %p434 = pneg %p69
        %p435 = pneg %p93
        %p436 = pneg %p90
        %p437 = pneg %p114
        %p438 = pneg %p111
        %p439 = pneg %p135
        %p440 = pneg %p132
        %p441 = pneg %p156
        %p442 = pneg %p153
        %p443 = pneg %p177
        %p444 = pneg %p174
        %p445 = pneg %p198
        %p446 = pneg %p195
        %p447 = pneg %p219
        %p448 = pneg %p216
        %p449 = pneg %p240
        %p450 = pneg %p237
        %p451 = pneg %p261
        %p452 = pneg %p258
        %p453 = pneg %p287
        %p454 = pneg %p284
        %s455 = sand.u32 %s274, 1
        %s456 = scalar_lea.sflag [#allocation4], %s455
        %s457 = sand.u32 %s274, 1
        %s458 = smul.addr %s457, 8
        %s459 = scalar_lea.vmem [#allocation11], %s458
        %v461 = vld [vmem:[%s405] sm:$0xff]
        %v462 = vlaneseq
        %v463 = vand.u32 %v462, 127
        %vm464 = vcmp.lt.s32.totalorder %v463, 8
        %v465 = vsel %vm464, 1, 0
        %v466 = vcvt.s32.f32 %v465
        %v467 = vld [vmem:[%s1] sm:$0x1]
        %v468 = vld [vmem:[%s2] sm:$0x1]
        %469 = vadd.xlane.f32.xlu0 %v461
        %v470 = vpop.xlane.xlu0 %469
        %v471 = vmul.f32 %v470, 0.125
        %v472 = vsub.f32 %v461, %v471
        %v473 = vmul.f32 %v472, %v466
        %v474 = vmul.f32 %v473, %v473
        %475 = vadd.xlane.f32.xlu0 %v474
        %v476 = vpop.xlane.xlu0 %475
        %v477 = vmul.f32 %v476, 0.125
        %v478 = vadd.f32 %v477, 1e-05
        %v479 = vrsqrt.pop %v478
        %v480 = vmul.f32 %v473, %v479
        %v482 = vlaneseq
        %v483 = vshrl.u32 %v482, 7
        %v484 = vsub.s32 0, %v483
        %v485 = vrot.slane %v467, %v484
        %v487 = vmul.f32 %v480, %v485
        %v489 = vlaneseq
        %v490 = vshrl.u32 %v489, 7
        %v491 = vsub.s32 0, %v490
        %v492 = vrot.slane %v468, %v491
        %v494 = vadd.f32 %v487, %v492
        %v495 = vmul.f32 %v494, %v494
        %v496 = vrot.slane %v495, 4
        %v497 = vadd.f32 %v495, %v496
        %v498 = vrot.slane %v497, 2
        %v499 = vadd.f32 %v497, %v498
        %v500 = vrot.slane %v499, 1
        %v501 = vadd.f32 %v499, %v500
        %v502 = vadd.f32 %v501, 0.0008
        %v503 = vadd.f32 %v502, 1e-08
        %v504 = vrsqrt.pop %v503
        %v505 = vmul.f32 %v494, %v504
        %v506 = vpack.c.bf16 %v505, %v505
        %v507 = vld [vmem:[#allocation5] sm:$0xf]
        %v508 = vld [vmem:[#allocation5 + $0x4] sm:$0xf]
        %v509 = vld [vmem:[#allocation5 + $0x8] sm:$0xf]
        %v510 = vld [vmem:[#allocation5 + $0xc] sm:$0xf]
        %v511 = vld [vmem:[#allocation5 + $0x10] sm:$0xf]
        %v512 = vld [vmem:[#allocation5 + $0x14] sm:$0xf]
        %v513 = vld [vmem:[#allocation5 + $0x18] sm:$0xf]
        %v514 = vld [vmem:[#allocation5 + $0x1c] sm:$0xf]
        %v515 = vld [vmem:[#allocation5 + $0x20] sm:$0xf]
        %v516 = vld [vmem:[#allocation5 + $0x24] sm:$0xf]
        %v517 = vld [vmem:[#allocation5 + $0x28] sm:$0xf]
        %v518 = vld [vmem:[#allocation5 + $0x2c] sm:$0xf]
        %v519 = vld [vmem:[#allocation5 + $0x30] sm:$0xf]
        %v520 = vld [vmem:[#allocation5 + $0x34] sm:$0xf]
        %v521 = vld [vmem:[#allocation5 + $0x38] sm:$0xf]
        %v522 = vld [vmem:[#allocation5 + $0x3c] sm:$0xf]
        %v539 = vunpack.c.l.b16 %v507
        %v540 = vunpack.c.l.b16 %v508
        %v541 = vunpack.c.l.b16 %v509
        %v542 = vunpack.c.l.b16 %v510
        %v543 = vunpack.c.l.b16 %v511
        %v544 = vunpack.c.l.b16 %v512
        %v545 = vunpack.c.l.b16 %v513
        %v546 = vunpack.c.l.b16 %v514
        %v547 = vunpack.c.l.b16 %v515
        %v548 = vunpack.c.l.b16 %v516
        %v549 = vunpack.c.l.b16 %v517
        %v550 = vunpack.c.l.b16 %v518
        %v551 = vunpack.c.l.b16 %v519
        %v552 = vunpack.c.l.b16 %v520
        %v553 = vunpack.c.l.b16 %v521
        %v554 = vunpack.c.l.b16 %v522
        %v555 = vpack.c.b16 %v540, %v539
        %v556 = vpack.c.b16 %v542, %v541
        %v557 = vpack.c.b16 %v544, %v543
        %v558 = vpack.c.b16 %v546, %v545
        %v559 = vpack.c.b16 %v548, %v547
        %v560 = vpack.c.b16 %v550, %v549
        %v561 = vpack.c.b16 %v552, %v551
        %v562 = vpack.c.b16 %v554, %v553
        %571 = vmatprep.subr.bf16.mxu0 0
        %572 = vmatpush1.bf16.msra.mxu0 %v562
        %573 = vmatprep.subr.bf16.mxu0 0
        %574 = vmatpush1.bf16.msra.mxu0 %v561
        %575 = vmatprep.subr.bf16.mxu0 0
        %576 = vmatpush1.bf16.msra.mxu0 %v560
        %577 = vmatprep.subr.bf16.mxu0 0
        %578 = vmatpush1.bf16.msra.mxu0 %v559
        %579 = vmatprep.subr.bf16.mxu0 0
        %580 = vmatpush1.bf16.msra.mxu0 %v558
        %581 = vmatprep.subr.bf16.mxu0 0
        %582 = vmatpush1.bf16.msra.mxu0 %v557
        %583 = vmatprep.subr.bf16.mxu0 0
        %584 = vmatpush1.bf16.msra.mxu0 %v556
        %585 = vmatprep.subr.bf16.mxu0 0
        %586 = vmatpush1.bf16.msra.mxu0 %v555
        %587 = vmatprep.subr.bf16.mxu0 0
        %588 = vmatpush2.bf16.msra.mxu0 0
        %589 = vmatprep.subr.bf16.mxu0 0
        %590 = vmatpush2.bf16.msra.mxu0 0
        %591 = vmatprep.subr.bf16.mxu0 0
        %592 = vmatpush2.bf16.msra.mxu0 0
        %593 = vmatprep.subr.bf16.mxu0 0
        %594 = vmatpush2.bf16.msra.mxu0 0
        %595 = vmatprep.subr.bf16.mxu0 0
        %596 = vmatpush2.bf16.msra.mxu0 0
        %597 = vmatprep.subr.bf16.mxu0 0
        %598 = vmatpush2.bf16.msra.mxu0 0
        %599 = vmatprep.subr.bf16.mxu0 0
        %600 = vmatpush2.bf16.msra.mxu0 0
        %601 = vmatprep.subr.bf16.mxu0 0
        %602 = vmatpush2.bf16.msra.mxu0 0
        %603 = vmatprep.mubr.bf16.mxu0 0
        %604 = vmatmul.mubr.bf16.gmra.mxu0 %v506
        %v605 = vpop.f32.mrf.mxu0
        %v606 = vadd.f32 0.0, %v605
        %v607 = vpop.f32.mrf.mxu0
        %v608 = vpop.f32.mrf.mxu0
        %v609 = vpop.f32.mrf.mxu0
        %610 = vdwg.mxu0
        %v611 = vmul.f32 %v606, %v606
        %v612 = vadd.f32 %v611, 1e-08
        %v613 = vrsqrt.pop %v612
        %v614 = vmul.f32 %v612, %v613
        %vm615 = vcmp.eq.f32.partialorder %v612, inf
        %v616 = vsel %vm615, %v612, %v614
        %vm617 = vcmp.eq.f32.partialorder %v612, 0.0
        %v618 = vand.u32 %v612, 2147483648
        %v619 = vsel %vm617, %v618, %v616
        %v620 = vmul.f32 %v619, %v466
        %v621 = vld [vmem:[#allocation7] sm:$0xf]
        %v622 = vld [vmem:[#allocation7 + $0x4] sm:$0xf]
        %v623 = vld [vmem:[#allocation7 + $0x8] sm:$0xf]
        %v624 = vld [vmem:[#allocation7 + $0xc] sm:$0xf]
        %v625 = vld [vmem:[#allocation7 + $0x10] sm:$0xf]
        %v626 = vld [vmem:[#allocation7 + $0x14] sm:$0xf]
        %v627 = vld [vmem:[#allocation7 + $0x18] sm:$0xf]
        %v628 = vld [vmem:[#allocation7 + $0x1c] sm:$0xf]
        %v629 = vld [vmem:[#allocation7 + $0x20] sm:$0xf]
        %v630 = vld [vmem:[#allocation7 + $0x24] sm:$0xf]
        %v631 = vld [vmem:[#allocation7 + $0x28] sm:$0xf]
        %v632 = vld [vmem:[#allocation7 + $0x2c] sm:$0xf]
        %v633 = vld [vmem:[#allocation7 + $0x30] sm:$0xf]
        %v634 = vld [vmem:[#allocation7 + $0x34] sm:$0xf]
        %v635 = vld [vmem:[#allocation7 + $0x38] sm:$0xf]
        %v636 = vld [vmem:[#allocation7 + $0x3c] sm:$0xf]
        %v653 = vunpack.c.l.b16 %v621
        %v654 = vunpack.c.l.b16 %v622
        %v655 = vunpack.c.l.b16 %v623
        %v656 = vunpack.c.l.b16 %v624
        %v657 = vunpack.c.l.b16 %v625
        %v658 = vunpack.c.l.b16 %v626
        %v659 = vunpack.c.l.b16 %v627
        %v660 = vunpack.c.l.b16 %v628
        %v661 = vunpack.c.l.b16 %v629
        %v662 = vunpack.c.l.b16 %v630
        %v663 = vunpack.c.l.b16 %v631
        %v664 = vunpack.c.l.b16 %v632
        %v665 = vunpack.c.l.b16 %v633
        %v666 = vunpack.c.l.b16 %v634
        %v667 = vunpack.c.l.b16 %v635
        %v668 = vunpack.c.l.b16 %v636
        %v669 = vpack.c.b16 %v654, %v653
        %v670 = vpack.c.b16 %v656, %v655
        %v671 = vpack.c.b16 %v658, %v657
        %v672 = vpack.c.b16 %v660, %v659
        %v673 = vpack.c.b16 %v662, %v661
        %v674 = vpack.c.b16 %v664, %v663
        %v675 = vpack.c.b16 %v666, %v665
        %v676 = vpack.c.b16 %v668, %v667
        %685 = vmatprep.subr.bf16.mxu0 0
        %686 = vmatpush1.bf16.msra.mxu0 %v676
        %687 = vmatprep.subr.bf16.mxu0 0
        %688 = vmatpush1.bf16.msra.mxu0 %v675
        %689 = vmatprep.subr.bf16.mxu0 0
        %690 = vmatpush1.bf16.msra.mxu0 %v674
        %691 = vmatprep.subr.bf16.mxu0 0
        %692 = vmatpush1.bf16.msra.mxu0 %v673
        %693 = vmatprep.subr.bf16.mxu0 0
        %694 = vmatpush1.bf16.msra.mxu0 %v672
        %695 = vmatprep.subr.bf16.mxu0 0
        %696 = vmatpush1.bf16.msra.mxu0 %v671
        %697 = vmatprep.subr.bf16.mxu0 0
        %698 = vmatpush1.bf16.msra.mxu0 %v670
        %699 = vmatprep.subr.bf16.mxu0 0
        %700 = vmatpush1.bf16.msra.mxu0 %v669
        %701 = vmatprep.subr.bf16.mxu0 0
        %702 = vmatpush2.bf16.msra.mxu0 0
        %703 = vmatprep.subr.bf16.mxu0 0
        %704 = vmatpush2.bf16.msra.mxu0 0
        %705 = vmatprep.subr.bf16.mxu0 0
        %706 = vmatpush2.bf16.msra.mxu0 0
        %707 = vmatprep.subr.bf16.mxu0 0
        %708 = vmatpush2.bf16.msra.mxu0 0
        %709 = vmatprep.subr.bf16.mxu0 0
        %710 = vmatpush2.bf16.msra.mxu0 0
        %711 = vmatprep.subr.bf16.mxu0 0
        %712 = vmatpush2.bf16.msra.mxu0 0
        %713 = vmatprep.subr.bf16.mxu0 0
        %714 = vmatpush2.bf16.msra.mxu0 0
        %715 = vmatprep.subr.bf16.mxu0 0
        %716 = vmatpush2.bf16.msra.mxu0 0
        %717 = vmatprep.mubr.bf16.mxu0 0
        %718 = vmatmul.mubr.bf16.gmra.mxu0 %v506
        %v719 = vpop.f32.mrf.mxu0
        %v720 = vadd.f32 0.0, %v719
        %v721 = vpop.f32.mrf.mxu0
        %v722 = vpop.f32.mrf.mxu0
        %v723 = vpop.f32.mrf.mxu0
        %724 = vdwg.mxu0
        %v725 = vpack.c.bf16 %v720, %v720
        %726 = vmatprep.subr.bf16.mxu0 0
        %727 = vmatpush1.bf16.xpose.msra.mxu0 0
        %728 = vmatprep.subr.bf16.mxu0 0
        %729 = vmatpush1.bf16.xpose.msra.mxu0 0
        %730 = vmatprep.subr.bf16.mxu0 0
        %731 = vmatpush1.bf16.xpose.msra.mxu0 0
        %732 = vmatprep.subr.bf16.mxu0 0
        %733 = vmatpush1.bf16.xpose.msra.mxu0 0
        %734 = vmatprep.subr.bf16.mxu0 0
        %735 = vmatpush1.bf16.xpose.msra.mxu0 0
        %736 = vmatprep.subr.bf16.mxu0 0
        %737 = vmatpush1.bf16.xpose.msra.mxu0 0
        %738 = vmatprep.subr.bf16.mxu0 0
        %739 = vmatpush1.bf16.xpose.msra.mxu0 0
        %740 = vmatprep.subr.bf16.mxu0 0
        %741 = vmatpush1.bf16.xpose.msra.mxu0 %v506
        %742 = vmatprep.subr.bf16.mxu0 0
        %743 = vmatpush2.bf16.xpose.msra.mxu0 0
        %744 = vmatprep.subr.bf16.mxu0 0
        %745 = vmatpush2.bf16.xpose.msra.mxu0 0
        %746 = vmatprep.subr.bf16.mxu0 0
        %747 = vmatpush2.bf16.xpose.msra.mxu0 0
        %748 = vmatprep.subr.bf16.mxu0 0
        %749 = vmatpush2.bf16.xpose.msra.mxu0 0
        %750 = vmatprep.subr.bf16.mxu0 0
        %751 = vmatpush2.bf16.xpose.msra.mxu0 0
        %752 = vmatprep.subr.bf16.mxu0 0
        %753 = vmatpush2.bf16.xpose.msra.mxu0 0
        %754 = vmatprep.subr.bf16.mxu0 0
        %755 = vmatpush2.bf16.xpose.msra.mxu0 0
        %756 = vmatprep.subr.bf16.mxu0 0
        %757 = vmatpush2.bf16.xpose.msra.mxu0 0
        %758 = vmatprep.mubr.bf16.mxu0 0
        %759 = vmatmul.mubr.bf16.gmra.mxu0 %v725
        %v760 = vpop.f32.mrf.mxu0
        %v761 = vadd.f32 0.0, %v760
        %v762 = vpop.f32.mrf.mxu0
        %v763 = vpop.f32.mrf.mxu0
        %v764 = vpop.f32.mrf.mxu0
        %765 = vdwg.mxu0
        %v766 = vmul.f32 %v761, %v761
        %v767 = vadd.f32 %v766, 1e-08
        %v768 = vrsqrt.pop %v767
        %v769 = vmul.f32 %v767, %v768
        %vm770 = vcmp.eq.f32.partialorder %v767, inf
        %v771 = vsel %vm770, %v767, %v769
        %vm772 = vcmp.eq.f32.partialorder %v767, 0.0
        %v773 = vand.u32 %v767, 2147483648
        %v774 = vsel %vm772, %v773, %v771
        %vm775 = vcmask 64512
        %v776 = vsel %vm775, %v774, -inf
        %777 = vmax.xlane.f32.xlu0 %v776
        %v778 = vpop.xlane.xlu0 %777
        %v779 = vsub.f32 %v774, %v778
        %v780 = vmul.f32 %v779, 1.442695
        %v781 = vpow.pop %v780
        %v782 = vsel %vm775, %v781, 0.0
        %783 = vadd.xlane.f32.xlu0 %v782
        %v784 = vpop.xlane.xlu0 %783
        %v785 = vrcp.pop %v784
        %v786 = vmul.f32 %v781, %v785
        %v787 = vpack.c.bf16 %v786, %v786
        %v788 = vpack.c.bf16 %v620, %v620
        %v790 = vsel %vm775, %v787, 0
        %vm792 = vcmask 1043456
        %v794 = vsel %vm792, %v788, 0
        %796 = vmatprep.subr.bf16.mxu0 0
        %797 = vmatpush1.bf16.msra.mxu0 0
        %798 = vmatprep.subr.bf16.mxu0 0
        %799 = vmatpush1.bf16.msra.mxu0 0
        %800 = vmatprep.subr.bf16.mxu0 0
        %801 = vmatpush1.bf16.msra.mxu0 0
        %802 = vmatprep.subr.bf16.mxu0 0
        %803 = vmatpush1.bf16.msra.mxu0 0
        %804 = vmatprep.subr.bf16.mxu0 0
        %805 = vmatpush1.bf16.msra.mxu0 0
        %806 = vmatprep.subr.bf16.mxu0 0
        %807 = vmatpush1.bf16.msra.mxu0 0
        %808 = vmatprep.subr.bf16.mxu0 0
        %809 = vmatpush1.bf16.msra.mxu0 0
        %810 = vmatprep.subr.bf16.mxu0 0
        %811 = vmatpush1.bf16.msra.mxu0 %v794
        %812 = vmatprep.subr.bf16.mxu0 0
        %813 = vmatpush2.bf16.msra.mxu0 0
        %814 = vmatprep.subr.bf16.mxu0 0
        %815 = vmatpush2.bf16.msra.mxu0 0
        %816 = vmatprep.subr.bf16.mxu0 0
        %817 = vmatpush2.bf16.msra.mxu0 0
        %818 = vmatprep.subr.bf16.mxu0 0
        %819 = vmatpush2.bf16.msra.mxu0 0
        %820 = vmatprep.subr.bf16.mxu0 0
        %821 = vmatpush2.bf16.msra.mxu0 0
        %822 = vmatprep.subr.bf16.mxu0 0
        %823 = vmatpush2.bf16.msra.mxu0 0
        %824 = vmatprep.subr.bf16.mxu0 0
        %825 = vmatpush2.bf16.msra.mxu0 0
        %826 = vmatprep.subr.bf16.mxu0 0
        %827 = vmatpush2.bf16.msra.mxu0 0
        %828 = vmatprep.mubr.bf16.mxu0 0
        %829 = vmatmul.mubr.bf16.gmra.mxu0 %v790
        %v830 = vpop.f32.mrf.mxu0
        %v831 = vadd.f32 0.0, %v830
        %v832 = vpop.f32.mrf.mxu0
        %v833 = vpop.f32.mrf.mxu0
        %v834 = vpop.f32.mrf.mxu0
        %835 = vdwg.mxu0
        %v836 = vadd.f32 %v461, %v831
        %v837 = vld [vmem:[%s5] sm:$0x1]
        %v838 = vld [vmem:[%s6] sm:$0x1]
        %839 = vadd.xlane.f32.xlu0 %v836
        %v840 = vpop.xlane.xlu0 %839
        %v841 = vmul.f32 %v840, 0.125
        %v842 = vsub.f32 %v836, %v841
        %v843 = vmul.f32 %v842, %v466
        %v844 = vmul.f32 %v843, %v843
        %845 = vadd.xlane.f32.xlu0 %v844
        %v846 = vpop.xlane.xlu0 %845
        %v847 = vmul.f32 %v846, 0.125
        %v848 = vadd.f32 %v847, 1e-05
        %v849 = vrsqrt.pop %v848
        %v850 = vmul.f32 %v843, %v849
        %v852 = vlaneseq
        %v853 = vshrl.u32 %v852, 7
        %v854 = vsub.s32 0, %v853
        %v855 = vrot.slane %v837, %v854
        %v857 = vmul.f32 %v850, %v855
        %v859 = vlaneseq
        %v860 = vshrl.u32 %v859, 7
        %v861 = vsub.s32 0, %v860
        %v862 = vrot.slane %v838, %v861
        %v864 = vadd.f32 %v857, %v862
        %v865 = vpack.c.bf16 %v864, %v864
        %v866 = vld [vmem:[#allocation8] sm:$0xf]
        %v867 = vld [vmem:[#allocation8 + $0x4] sm:$0xf]
        %v868 = vld [vmem:[#allocation8 + $0x8] sm:$0xf]
        %v869 = vld [vmem:[#allocation8 + $0xc] sm:$0xf]
        %v870 = vld [vmem:[#allocation8 + $0x10] sm:$0xf]
        %v871 = vld [vmem:[#allocation8 + $0x14] sm:$0xf]
        %v872 = vld [vmem:[#allocation8 + $0x18] sm:$0xf]
        %v873 = vld [vmem:[#allocation8 + $0x1c] sm:$0xf]
        %v874 = vld [vmem:[#allocation8 + $0x20] sm:$0xf]
        %v875 = vld [vmem:[#allocation8 + $0x24] sm:$0xf]
        %v876 = vld [vmem:[#allocation8 + $0x28] sm:$0xf]
        %v877 = vld [vmem:[#allocation8 + $0x2c] sm:$0xf]
        %v878 = vld [vmem:[#allocation8 + $0x30] sm:$0xf]
        %v879 = vld [vmem:[#allocation8 + $0x34] sm:$0xf]
        %v880 = vld [vmem:[#allocation8 + $0x38] sm:$0xf]
        %v881 = vld [vmem:[#allocation8 + $0x3c] sm:$0xf]
        %v882 = vld [vmem:[%s8] sm:$0x1]
        %v884 = vlaneseq
        %v885 = vshrl.u32 %v884, 7
        %v886 = vsub.s32 0, %v885
        %v887 = vrot.slane %v882, %v886
        %v905 = vunpack.c.l.b16 %v866
        %v906 = vunpack.c.l.b16 %v867
        %v907 = vunpack.c.l.b16 %v868
        %v908 = vunpack.c.l.b16 %v869
        %v909 = vunpack.c.l.b16 %v870
        %v910 = vunpack.c.l.b16 %v871
        %v911 = vunpack.c.l.b16 %v872
        %v912 = vunpack.c.l.b16 %v873
        %v913 = vunpack.c.l.b16 %v874
        %v914 = vunpack.c.l.b16 %v875
        %v915 = vunpack.c.l.b16 %v876
        %v916 = vunpack.c.l.b16 %v877
        %v917 = vunpack.c.l.b16 %v878
        %v918 = vunpack.c.l.b16 %v879
        %v919 = vunpack.c.l.b16 %v880
        %v920 = vunpack.c.l.b16 %v881
        %v921 = vpack.c.b16 %v906, %v905
        %v922 = vpack.c.b16 %v908, %v907
        %v923 = vpack.c.b16 %v910, %v909
        %v924 = vpack.c.b16 %v912, %v911
        %v925 = vpack.c.b16 %v914, %v913
        %v926 = vpack.c.b16 %v916, %v915
        %v927 = vpack.c.b16 %v918, %v917
        %v928 = vpack.c.b16 %v920, %v919
        %937 = vmatprep.subr.bf16.mxu0 0
        %938 = vmatpush1.bf16.msra.mxu0 %v928
        %939 = vmatprep.subr.bf16.mxu0 0
        %940 = vmatpush1.bf16.msra.mxu0 %v927
        %941 = vmatprep.subr.bf16.mxu0 0
        %942 = vmatpush1.bf16.msra.mxu0 %v926
        %943 = vmatprep.subr.bf16.mxu0 0
        %944 = vmatpush1.bf16.msra.mxu0 %v925
        %945 = vmatprep.subr.bf16.mxu0 0
        %946 = vmatpush1.bf16.msra.mxu0 %v924
        %947 = vmatprep.subr.bf16.mxu0 0
        %948 = vmatpush1.bf16.msra.mxu0 %v923
        %949 = vmatprep.subr.bf16.mxu0 0
        %950 = vmatpush1.bf16.msra.mxu0 %v922
        %951 = vmatprep.subr.bf16.mxu0 0
        %952 = vmatpush1.bf16.msra.mxu0 %v921
        %953 = vmatprep.subr.bf16.mxu0 0
        %954 = vmatpush2.bf16.msra.mxu0 0
        %955 = vmatprep.subr.bf16.mxu0 0
        %956 = vmatpush2.bf16.msra.mxu0 0
        %957 = vmatprep.subr.bf16.mxu0 0
        %958 = vmatpush2.bf16.msra.mxu0 0
        %959 = vmatprep.subr.bf16.mxu0 0
        %960 = vmatpush2.bf16.msra.mxu0 0
        %961 = vmatprep.subr.bf16.mxu0 0
        %962 = vmatpush2.bf16.msra.mxu0 0
        %963 = vmatprep.subr.bf16.mxu0 0
        %964 = vmatpush2.bf16.msra.mxu0 0
        %965 = vmatprep.subr.bf16.mxu0 0
        %966 = vmatpush2.bf16.msra.mxu0 0
        %967 = vmatprep.subr.bf16.mxu0 0
        %968 = vmatpush2.bf16.msra.mxu0 0
        %969 = vmatprep.mubr.bf16.mxu0 0
        %970 = vmatmul.mubr.bf16.gmra.mxu0 %v865
        %v971 = vpop.f32.mrf.mxu0
        %v972 = vadd.f32 %v887, %v971
        %v973 = vpop.f32.mrf.mxu0
        %v974 = vpop.f32.mrf.mxu0
        %v975 = vpop.f32.mrf.mxu0
        %976 = vdwg.mxu0
        %v977 = vmul.f32 %v972, 0.5
        %v978 = vmul.f32 %v972, 0.70710677
        %v979 = verf.f32.pop %v978
        %v980 = vadd.f32 %v979, 1.0
        %v981 = vmul.f32 %v977, %v980
        %v982 = vpack.c.bf16 %v981, %v981
        %v983 = vld [vmem:[#allocation10] sm:$0xf]
        %v984 = vld [vmem:[#allocation10 + $0x4] sm:$0xf]
        %v985 = vld [vmem:[#allocation10 + $0x8] sm:$0xf]
        %v986 = vld [vmem:[#allocation10 + $0xc] sm:$0xf]
        %v987 = vld [vmem:[#allocation10 + $0x10] sm:$0xf]
        %v988 = vld [vmem:[#allocation10 + $0x14] sm:$0xf]
        %v989 = vld [vmem:[#allocation10 + $0x18] sm:$0xf]
        %v990 = vld [vmem:[#allocation10 + $0x1c] sm:$0xf]
        %v991 = vld [vmem:[#allocation10 + $0x20] sm:$0xf]
        %v992 = vld [vmem:[#allocation10 + $0x24] sm:$0xf]
        %v993 = vld [vmem:[#allocation10 + $0x28] sm:$0xf]
        %v994 = vld [vmem:[#allocation10 + $0x2c] sm:$0xf]
        %v995 = vld [vmem:[#allocation10 + $0x30] sm:$0xf]
        %v996 = vld [vmem:[#allocation10 + $0x34] sm:$0xf]
        %v997 = vld [vmem:[#allocation10 + $0x38] sm:$0xf]
        %v998 = vld [vmem:[#allocation10 + $0x3c] sm:$0xf]
        %v999 = vld [vmem:[%s10] sm:$0x1]
        %v1001 = vlaneseq
        %v1002 = vshrl.u32 %v1001, 7
        %v1003 = vsub.s32 0, %v1002
        %v1004 = vrot.slane %v999, %v1003
        %v1022 = vunpack.c.l.b16 %v983
        %v1023 = vunpack.c.l.b16 %v984
        %v1024 = vunpack.c.l.b16 %v985
        %v1025 = vunpack.c.l.b16 %v986
        %v1026 = vunpack.c.l.b16 %v987
        %v1027 = vunpack.c.l.b16 %v988
        %v1028 = vunpack.c.l.b16 %v989
        %v1029 = vunpack.c.l.b16 %v990
        %v1030 = vunpack.c.l.b16 %v991
        %v1031 = vunpack.c.l.b16 %v992
        %v1032 = vunpack.c.l.b16 %v993
        %v1033 = vunpack.c.l.b16 %v994
        %v1034 = vunpack.c.l.b16 %v995
        %v1035 = vunpack.c.l.b16 %v996
        %v1036 = vunpack.c.l.b16 %v997
        %v1037 = vunpack.c.l.b16 %v998
        %v1038 = vpack.c.b16 %v1023, %v1022
        %v1039 = vpack.c.b16 %v1025, %v1024
        %v1040 = vpack.c.b16 %v1027, %v1026
        %v1041 = vpack.c.b16 %v1029, %v1028
        %v1042 = vpack.c.b16 %v1031, %v1030
        %v1043 = vpack.c.b16 %v1033, %v1032
        %v1044 = vpack.c.b16 %v1035, %v1034
        %v1045 = vpack.c.b16 %v1037, %v1036
        %1054 = vmatprep.subr.bf16.mxu0 0
        %1055 = vmatpush1.bf16.msra.mxu0 %v1045
        %1056 = vmatprep.subr.bf16.mxu0 0
        %1057 = vmatpush1.bf16.msra.mxu0 %v1044
        %1058 = vmatprep.subr.bf16.mxu0 0
        %1059 = vmatpush1.bf16.msra.mxu0 %v1043
        %1060 = vmatprep.subr.bf16.mxu0 0
        %1061 = vmatpush1.bf16.msra.mxu0 %v1042
        %1062 = vmatprep.subr.bf16.mxu0 0
        %1063 = vmatpush1.bf16.msra.mxu0 %v1041
        %1064 = vmatprep.subr.bf16.mxu0 0
        %1065 = vmatpush1.bf16.msra.mxu0 %v1040
        %1066 = vmatprep.subr.bf16.mxu0 0
        %1067 = vmatpush1.bf16.msra.mxu0 %v1039
        %1068 = vmatprep.subr.bf16.mxu0 0
        %1069 = vmatpush1.bf16.msra.mxu0 %v1038
        %1070 = vmatprep.subr.bf16.mxu0 0
        %1071 = vmatpush2.bf16.msra.mxu0 0
        %1072 = vmatprep.subr.bf16.mxu0 0
        %1073 = vmatpush2.bf16.msra.mxu0 0
        %1074 = vmatprep.subr.bf16.mxu0 0
        %1075 = vmatpush2.bf16.msra.mxu0 0
        %1076 = vmatprep.subr.bf16.mxu0 0
        %1077 = vmatpush2.bf16.msra.mxu0 0
        %1078 = vmatprep.subr.bf16.mxu0 0
        %1079 = vmatpush2.bf16.msra.mxu0 0
        %1080 = vmatprep.subr.bf16.mxu0 0
        %1081 = vmatpush2.bf16.msra.mxu0 0
        %1082 = vmatprep.subr.bf16.mxu0 0
        %1083 = vmatpush2.bf16.msra.mxu0 0
        %1084 = vmatprep.subr.bf16.mxu0 0
        %1085 = vmatpush2.bf16.msra.mxu0 0
        %1086 = vmatprep.mubr.bf16.mxu0 0
        %1087 = vmatmul.mubr.bf16.gmra.mxu0 %v982
        %v1088 = vpop.f32.mrf.mxu0
        %v1089 = vadd.f32 %v1004, %v1088
        %v1090 = vpop.f32.mrf.mxu0
        %v1091 = vpop.f32.mrf.mxu0
        %v1092 = vpop.f32.mrf.mxu0
        %1093 = vdwg.mxu0
        %v1094 = vadd.f32 %v836, %v1089
        %1095 = vst [vmem:[%s459] sm:$0xff] %v1094
        %s1096 = sand.u32 %s274, 1
        %s1097 = scalar_lea.sflag [#allocation4], %s1096
        %s1098 = sand.u32 %s274, 1
        %s1099 = smul.addr %s1098, 8
        %s1100 = scalar_lea.vmem [#allocation11], %s1099
        // Predicated region
        $region85: #{tpu_custom_call.1} parent=63 // pred_check
          %p1101 = pneg %p284
        $region86: #{tpu_custom_call.1} parent=63 // pred_check_branch
          %1103 = sbr.rel (%p1101) target = $region88
        $region87: #{tpu_custom_call.1} parent=63 // pred_region
          %s1105 = ssub.s32 128, 128
          %1106 = vsyncadd %s1097, %s1105
          %s1107 = smul.addr %s30, 128
          %s1108 = scalar_lea.hbm %s11, %s1107
          %s1110 = sshll.u32 %s1100, 4
          %s1111 = int_to_ptr.vmem [resolvable:$true] %s1110
          %1113 = dma.vmem_to_hbm [thread:$0]  %s1111, 128, %s1108, %s1097
        $region88: #{tpu_custom_call.1} parent=63 // pred_fallthru
          _
      $region64: #{tpu_custom_call.1} parent=5 // pred_fallthru
        _
      %p1114 = scmp.le.s32.totalorder 2, %s25
      // Predicated region
      $region89: #{tpu_custom_call.1} parent=5 // pred_check
        %p1115 = pneg %p1114
      $region90: #{tpu_custom_call.1} parent=5 // pred_check_branch
        %1117 = sbr.rel (%p1115) target = $region92
      $region91: #{tpu_custom_call.1} parent=5 // pred_region
        %s1118 = ssub.s32 %s25, 2
        // Predicated region
        $region93: #{tpu_custom_call.1} parent=91 // pred_check
          %p1119 = pneg %p290
        $region94: #{tpu_custom_call.1} parent=91 // pred_check_branch
          %1121 = sbr.rel (%p1119) target = $region96
        $region95: #{tpu_custom_call.1} parent=91 // pred_region
          %s1122 = sand.u32 %s275, 1
          %s1123 = scalar_lea.sflag [#allocation4], %s1122
          %s1124 = sand.u32 %s275, 1
          %s1125 = smul.addr %s1124, 8
          %s1126 = scalar_lea.vmem [#allocation11], %s1125
          %1127 = dma.done %s1123, 128
        $region96: #{tpu_custom_call.1} parent=91 // pred_fallthru
          _
      $region92: #{tpu_custom_call.1} parent=5 // pred_fallthru
        _
    $region6: #{tpu_custom_call.1} parent=1 // loop_footer
      %s29 = sadd.s32 1, %s25
    $region7: #{tpu_custom_call.1} parent=1 // loop_footer_branch
      %24 = sbr.rel target = $region3
    $region8: #{tpu_custom_call.1} parent=1 // loop_exit
      _
    %1128 = vsyncpa [#allocation3], 1
    %s1129 = scalar_lea.sflag [#allocation3], 1
    %1130 = vsyncpa %s1129, 1
    %1131 = vsyncpa [#allocation6], 1
    %1132 = vsyncpa [#allocation9], 1
    %1133 = vsyncpa [#allocation4], 1
    %s1134 = scalar_lea.sflag [#allocation4], 1
    %1135 = vsyncpa %s1134, 1

</llo_original>
